<compile_context>
chip_gen: v7x
topology: tpu7x:2x2x1
jax: 0.10.0
libtpu: 0.0.40
codegen_flags: <defaults>
</compile_context>

<pallas_src>
import functools

import jax
import jax.numpy as jnp
from jax.experimental import pallas as pl
from jax.experimental.pallas import tpu as pltpu


# ----------------------------------------------------------------------------
# Pallas kernel: in-kernel im2col + GEMM + folded-BN affine + ReLU
# ----------------------------------------------------------------------------
def _conv_bn_relu_kernel(x_ref, w_ref, s_ref, b_ref, o_ref, *,
                         KH, KW, stride, th, OW):
    # x_ref : (Cin, H_pad, W_pad)  whole padded image (resident across row tiles)
    # w_ref : (Cout, K)            conv weight, K flattened as (kh, kw, cin)
    # s_ref : (Cout, 1)            folded BN scale                     (f32)
    # b_ref : (Cout, 1)            folded BN bias (incl. conv bias)    (f32)
    # o_ref : (Cout, th*OW)        lane-dense output tile
    cin = x_ref.shape[0]
    tm = th * OW
    row0 = pl.program_id(1) * (th * stride)     # first input row of this tile

    taps = []
    for kh in range(KH):
        for kw in range(KW):
            if stride == 1:
                t = x_ref[:, pl.ds(row0 + kh, th), pl.ds(kw, OW)]
            else:
                t = x_ref[:, pl.ds(row0 + kh, th, stride),
                          pl.ds(kw, OW, stride)]
            taps.append(t)                                   # (Cin, th, OW)

    # (K, th, OW) with K ordered (kh, kw, cin); VMEM-only, never hits HBM.
    patches = jnp.concatenate(taps, axis=0)
    patches = patches.reshape(KH * KW * cin, tm)             # (K, tm) relayout

    acc = jnp.dot(w_ref[...], patches, preferred_element_type=jnp.float32)
    y = acc * s_ref[...] + b_ref[...]                        # f32 epilogue
    o_ref[...] = jnp.maximum(y, 0.0).astype(o_ref.dtype)


# ----------------------------------------------------------------------------
# Tile selection: output-row tile height
# ----------------------------------------------------------------------------
def _pick_row_tile(OH, OW, N, target_m=2048):
    """th | OH with th*OW a multiple of 128 (or th == OH, full-extent block)."""
    divisors = [t for t in range(1, OH + 1) if OH % t == 0]
    aligned = [t for t in divisors if (t * OW) % 128 == 0]
    pool = aligned if aligned else [OH]            # full-extent is always legal
    under = [t for t in pool if t * OW <= target_m]
    th = max(under) if under else min(pool)
    # v7x megacore: prefer >= 2 total grid steps when the shape allows it.
    if N * (OH // th) < 2:
        smaller = [t for t in pool if t < th and N * (OH // t) >= 2]
        if smaller:
            th = max(smaller)
    return th


# ----------------------------------------------------------------------------
# pallas_call wrapper
# ----------------------------------------------------------------------------
def _fused_conv_bn_relu(x_pad, w_mat, scale, bias, *, KH, KW, stride,
                        OH, OW, out_dtype):
    N, Cin, H_pad, W_pad = x_pad.shape
    Cout, K = w_mat.shape
    M = OH * OW

    th = _pick_row_tile(OH, OW, N)
    tm = th * OW
    n_rt = OH // th

    in_bytes = jnp.dtype(x_pad.dtype).itemsize
    out_bytes = jnp.dtype(out_dtype).itemsize

    kernel = functools.partial(_conv_bn_relu_kernel,
                               KH=KH, KW=KW, stride=stride, th=th, OW=OW)

    # HBM traffic with fused im2col: padded input + tiny weights + output.
    cost = pl.CostEstimate(
        flops=2 * N * M * K * Cout,
        transcendentals=0,
        bytes_accessed=(N * Cin * H_pad * W_pad * in_bytes
                        + Cout * K * in_bytes
                        + 2 * Cout * 4
                        + N * Cout * M * out_bytes),
    )

    # Working set: double-buffered image + output tile, resident params, plus
    # in-VMEM patch-assembly temporaries; capped at v7x's 64 MiB physical VMEM.
    x_blk = Cin * H_pad * W_pad * in_bytes
    o_blk = Cout * tm * out_bytes
    need = (2 * (x_blk + o_blk)
            + 2 * (Cout * K * in_bytes + 2 * Cout * 4)
            + 4 * K * tm * in_bytes)
    vmem_limit = int(min(64 * 2**20, max(16 * 2**20, 2 * need)))

    out = pl.pallas_call(
        kernel,
        out_shape=jax.ShapeDtypeStruct((N, Cout, M), out_dtype),
        grid_spec=pltpu.PrefetchScalarGridSpec(
            num_scalar_prefetch=0,
            grid=(N, n_rt),
            in_specs=[
                # whole padded image; row-tile-invariant -> DMA'd once per image
                pl.BlockSpec((None, Cin, H_pad, W_pad),
                             lambda n, i: (n, 0, 0, 0)),
                # tiny grid-invariant weight / folded BN scale / bias
                pl.BlockSpec((Cout, K), lambda n, i: (0, 0)),
                pl.BlockSpec((Cout, 1), lambda n, i: (0, 0)),
                pl.BlockSpec((Cout, 1), lambda n, i: (0, 0)),
            ],
            out_specs=pl.BlockSpec((None, Cout, tm), lambda n, i: (n, 0, i)),
        ),
        compiler_params=pltpu.CompilerParams(
            dimension_semantics=("parallel", "parallel"),
            vmem_limit_bytes=vmem_limit,
        ),
        cost_estimate=cost,
    )(x_pad, w_mat, scale, bias)
    return out


# ----------------------------------------------------------------------------
# Wrapper reproducing the PyTorch module's forward pass
# ----------------------------------------------------------------------------
def conv2d_block_forward(x_nchw, params, *, stride, padding,
                         compute_dtype=jnp.bfloat16, out_dtype=jnp.float32):
    """ReLU(BatchNorm2d(Conv2d(x))) with BN in eval mode.

    x_nchw: (N, Cin, H, W) float32
    compute_dtype: dtype of the streamed image/weights (bf16 halves HBM bytes;
                   MXU accumulation and the BN/ReLU epilogue stay f32).
    out_dtype: output dtype (set to bf16 if the consumer accepts it).
    """
    w = params["conv_w"]          # (Cout, Cin, KH, KW)
    b = params["conv_b"]          # (Cout,)
    gamma = params["bn_gamma"]    # (Cout,)
    beta = params["bn_beta"]      # (Cout,)
    mean = params["bn_mean"]      # (Cout,)
    var = params["bn_var"]        # (Cout,)
    eps = params["bn_eps"]

    Cout, Cin, KH, KW = w.shape
    N, _, H, W = x_nchw.shape
    OH = (H + 2 * padding - KH) // stride + 1
    OW = (W + 2 * padding - KW) // stride + 1
    K = Cin * KH * KW

    x_c = x_nchw.astype(compute_dtype)
    if padding > 0:
        x_pad = jnp.pad(x_c, ((0, 0), (0, 0),
                              (padding, padding), (padding, padding)))
    else:
        x_pad = x_c

    # weight flattened as (kh, kw, cin) to match the in-kernel tap order
    w_mat = jnp.transpose(w, (0, 2, 3, 1)).reshape(Cout, K).astype(compute_dtype)

    # fold BN (eval mode) + conv bias into per-channel scale/bias (f32)
    inv_std = 1.0 / jnp.sqrt(var + eps)
    eff_scale = (gamma * inv_std).astype(jnp.float32)[:, None]             # (Cout,1)
    eff_bias = (beta - mean * gamma * inv_std
                + b * gamma * inv_std).astype(jnp.float32)[:, None]        # (Cout,1)

    out = _fused_conv_bn_relu(x_pad, w_mat, eff_scale, eff_bias,
                              KH=KH, KW=KW, stride=stride,
                              OH=OH, OW=OW, out_dtype=out_dtype)
    return out.reshape(N, Cout, OH, OW)


# ----------------------------------------------------------------------------
# Pure-JAX reference (for sanity check)
# ----------------------------------------------------------------------------
def _reference(x_nchw, params, *, stride, padding):
    w = params["conv_w"]
    conv = jax.lax.conv_general_dilated(
        x_nchw, w, window_strides=(stride, stride),
        padding=[(padding, padding), (padding, padding)],
        dimension_numbers=("NCHW", "OIHW", "NCHW"))
    conv = conv + params["conv_b"][None, :, None, None]
    inv_std = 1.0 / jnp.sqrt(params["bn_var"] + params["bn_eps"])
    y = (conv - params["bn_mean"][None, :, None, None]) * \
        (params["bn_gamma"] * inv_std)[None, :, None, None] + \
        params["bn_beta"][None, :, None, None]
    return jnp.maximum(y, 0.0)


if __name__ == "__main__":
    # Module config (small, consistent with audio2pose-style conv blocks)
    cin, cout = 4, 8
    kernel_size, stride, padding = 3, 1, 1
    N, H, W = 2, 16, 16

    key = jax.random.PRNGKey(0)
    k_x, k_w, k_b, k_g, k_be, k_m, k_v = jax.random.split(key, 7)

    x = jax.random.normal(k_x, (N, cin, H, W), dtype=jnp.float32)

    params = {
        "conv_w": jax.random.normal(k_w, (cout, cin, kernel_size, kernel_size),
                                    dtype=jnp.float32) * 0.1,
        "conv_b": jax.random.normal(k_b, (cout,), dtype=jnp.float32) * 0.1,
        "bn_gamma": 1.0 + 0.1 * jax.random.normal(k_g, (cout,), dtype=jnp.float32),
        "bn_beta": 0.1 * jax.random.normal(k_be, (cout,), dtype=jnp.float32),
        "bn_mean": 0.1 * jax.random.normal(k_m, (cout,), dtype=jnp.float32),
        "bn_var": jnp.abs(jax.random.normal(k_v, (cout,), dtype=jnp.float32)) + 0.5,
        "bn_eps": 1e-5,
    }

    ref = _reference(x, params, stride=stride, padding=padding)

    # 1) f32 streaming path: exact conv math, tight tolerance.
    fwd_f32 = jax.jit(functools.partial(conv2d_block_forward,
                                        stride=stride, padding=padding,
                                        compute_dtype=jnp.float32))
    out_f32 = jax.block_until_ready(fwd_f32(x, params))
    assert out_f32.shape == (N, cout, H, W), out_f32.shape
    assert jnp.allclose(out_f32, ref, atol=1e-4, rtol=1e-3), \
        float(jnp.max(jnp.abs(out_f32 - ref)))

    # 2) default bf16 streaming path (perf configuration): looser tolerance
    #    because patches/weights are quantized to bf16 (accumulation stays f32).
    fwd_bf16 = jax.jit(functools.partial(conv2d_block_forward,
                                         stride=stride, padding=padding))
    out_bf16 = jax.block_until_ready(fwd_bf16(x, params))
    assert out_bf16.shape == (N, cout, H, W), out_bf16.shape
    assert jnp.allclose(out_bf16, ref, atol=5e-2, rtol=5e-2), \
        float(jnp.max(jnp.abs(out_bf16 - ref)))

    print("KERNEL_OK")
</pallas_src>

<mosaic_0001>
module attributes {stable_mosaic.version = 11 : i64} {
  func.func @_conv_bn_relu_kernel(%arg0: i32, %arg1: i32, %arg2: memref<1x4x18x18xf32, #tpu.memory_space<vmem>>, %arg3: memref<8x36xf32, #tpu.memory_space<vmem>>, %arg4: memref<8x1xf32, #tpu.memory_space<vmem>>, %arg5: memref<8x1xf32, #tpu.memory_space<vmem>>, %arg6: memref<1x8x256xf32, #tpu.memory_space<vmem>>) attributes {dimension_semantics = [#tpu.dimension_semantics<parallel>, #tpu.dimension_semantics<parallel>], iteration_bounds = array<i64: 2, 1>, scalar_prefetch = 0 : i64, scratch_operands = 0 : i64, tpu.core_type = #tpu.core_type<tc>, window_params = [{transform_indices = @transform_0, window_bounds = array<i64: 1, 4, 18, 18>}, {pipeline_mode = #tpu.pipeline_mode<synchronous>, transform_indices = @transform_1, window_bounds = array<i64: 8, 36>}, {pipeline_mode = #tpu.pipeline_mode<synchronous>, transform_indices = @transform_2, window_bounds = array<i64: 8, 1>}, {pipeline_mode = #tpu.pipeline_mode<synchronous>, transform_indices = @transform_3, window_bounds = array<i64: 8, 1>}, {transform_indices = @transform_4, window_bounds = array<i64: 1, 8, 256>}]} {
    %c16_i32 = arith.constant 16 : i32
    %0 = arith.muli %arg1, %c16_i32 : i32
    %c0_i32 = arith.constant 0 : i32
    %1 = arith.addi %0, %c0_i32 : i32
    %c0 = arith.constant 0 : index
    %c0_0 = arith.constant 0 : index
    %2 = arith.index_cast %1 : i32 to index
    %c0_1 = arith.constant 0 : index
    %3 = vector.load %arg2[%c0, %c0_0, %2, %c0_1] : memref<1x4x18x18xf32, #tpu.memory_space<vmem>>, vector<1x4x16x16xf32>
    %4 = vector.shape_cast %3 : vector<1x4x16x16xf32> to vector<4x16x16xf32>
    %c0_i32_2 = arith.constant 0 : i32
    %5 = arith.addi %0, %c0_i32_2 : i32
    %c0_3 = arith.constant 0 : index
    %c0_4 = arith.constant 0 : index
    %6 = arith.index_cast %5 : i32 to index
    %c1 = arith.constant 1 : index
    %7 = vector.load %arg2[%c0_3, %c0_4, %6, %c1] : memref<1x4x18x18xf32, #tpu.memory_space<vmem>>, vector<1x4x16x16xf32>
    %8 = vector.shape_cast %7 : vector<1x4x16x16xf32> to vector<4x16x16xf32>
    %c0_i32_5 = arith.constant 0 : i32
    %9 = arith.addi %0, %c0_i32_5 : i32
    %c0_6 = arith.constant 0 : index
    %c0_7 = arith.constant 0 : index
    %10 = arith.index_cast %9 : i32 to index
    %c2 = arith.constant 2 : index
    %11 = vector.load %arg2[%c0_6, %c0_7, %10, %c2] : memref<1x4x18x18xf32, #tpu.memory_space<vmem>>, vector<1x4x16x16xf32>
    %12 = vector.shape_cast %11 : vector<1x4x16x16xf32> to vector<4x16x16xf32>
    %c1_i32 = arith.constant 1 : i32
    %13 = arith.addi %0, %c1_i32 : i32
    %c0_8 = arith.constant 0 : index
    %c0_9 = arith.constant 0 : index
    %14 = arith.index_cast %13 : i32 to index
    %c0_10 = arith.constant 0 : index
    %15 = vector.load %arg2[%c0_8, %c0_9, %14, %c0_10] : memref<1x4x18x18xf32, #tpu.memory_space<vmem>>, vector<1x4x16x16xf32>
    %16 = vector.shape_cast %15 : vector<1x4x16x16xf32> to vector<4x16x16xf32>
    %c1_i32_11 = arith.constant 1 : i32
    %17 = arith.addi %0, %c1_i32_11 : i32
    %c0_12 = arith.constant 0 : index
    %c0_13 = arith.constant 0 : index
    %18 = arith.index_cast %17 : i32 to index
    %c1_14 = arith.constant 1 : index
    %19 = vector.load %arg2[%c0_12, %c0_13, %18, %c1_14] : memref<1x4x18x18xf32, #tpu.memory_space<vmem>>, vector<1x4x16x16xf32>
    %20 = vector.shape_cast %19 : vector<1x4x16x16xf32> to vector<4x16x16xf32>
    %c1_i32_15 = arith.constant 1 : i32
    %21 = arith.addi %0, %c1_i32_15 : i32
    %c0_16 = arith.constant 0 : index
    %c0_17 = arith.constant 0 : index
    %22 = arith.index_cast %21 : i32 to index
    %c2_18 = arith.constant 2 : index
    %23 = vector.load %arg2[%c0_16, %c0_17, %22, %c2_18] : memref<1x4x18x18xf32, #tpu.memory_space<vmem>>, vector<1x4x16x16xf32>
    %24 = vector.shape_cast %23 : vector<1x4x16x16xf32> to vector<4x16x16xf32>
    %c2_i32 = arith.constant 2 : i32
    %25 = arith.addi %0, %c2_i32 : i32
    %c0_19 = arith.constant 0 : index
    %c0_20 = arith.constant 0 : index
    %26 = arith.index_cast %25 : i32 to index
    %c0_21 = arith.constant 0 : index
    %27 = vector.load %arg2[%c0_19, %c0_20, %26, %c0_21] : memref<1x4x18x18xf32, #tpu.memory_space<vmem>>, vector<1x4x16x16xf32>
    %28 = vector.shape_cast %27 : vector<1x4x16x16xf32> to vector<4x16x16xf32>
    %c2_i32_22 = arith.constant 2 : i32
    %29 = arith.addi %0, %c2_i32_22 : i32
    %c0_23 = arith.constant 0 : index
    %c0_24 = arith.constant 0 : index
    %30 = arith.index_cast %29 : i32 to index
    %c1_25 = arith.constant 1 : index
    %31 = vector.load %arg2[%c0_23, %c0_24, %30, %c1_25] : memref<1x4x18x18xf32, #tpu.memory_space<vmem>>, vector<1x4x16x16xf32>
    %32 = vector.shape_cast %31 : vector<1x4x16x16xf32> to vector<4x16x16xf32>
    %c2_i32_26 = arith.constant 2 : i32
    %33 = arith.addi %0, %c2_i32_26 : i32
    %c0_27 = arith.constant 0 : index
    %c0_28 = arith.constant 0 : index
    %34 = arith.index_cast %33 : i32 to index
    %c2_29 = arith.constant 2 : index
    %35 = vector.load %arg2[%c0_27, %c0_28, %34, %c2_29] : memref<1x4x18x18xf32, #tpu.memory_space<vmem>>, vector<1x4x16x16xf32>
    %36 = vector.shape_cast %35 : vector<1x4x16x16xf32> to vector<4x16x16xf32>
    %37 = tpu.concatenate %4, %8, %12, %16, %20, %24, %28, %32, %36 in 0 : vector<4x16x16xf32>, vector<4x16x16xf32>, vector<4x16x16xf32>, vector<4x16x16xf32>, vector<4x16x16xf32>, vector<4x16x16xf32>, vector<4x16x16xf32>, vector<4x16x16xf32>, vector<4x16x16xf32> -> vector<36x16x16xf32>
    %38 = vector.shape_cast %37 : vector<36x16x16xf32> to vector<36x256xf32>
    %c0_30 = arith.constant 0 : index
    %c0_31 = arith.constant 0 : index
    %39 = vector.load %arg3[%c0_30, %c0_31] : memref<8x36xf32, #tpu.memory_space<vmem>>, vector<8x36xf32>
    %cst = arith.constant dense<0.000000e+00> : vector<8x256xf32>
    %40 = tpu.matmul %39, %38, %cst {dimension_numbers = #tpu.dot_dimension_numbers<[1], [0], [0], [1], [0, 0, 1, 1], [], []>} : vector<8x36xf32>, vector<36x256xf32>, vector<8x256xf32> -> vector<8x256xf32>
    %c0_32 = arith.constant 0 : index
    %c0_33 = arith.constant 0 : index
    %41 = vector.load %arg4[%c0_32, %c0_33] : memref<8x1xf32, #tpu.memory_space<vmem>>, vector<8x1xf32>
    %42 = vector.broadcast %41 : vector<8x1xf32> to vector<8x256xf32>
    %43 = arith.mulf %40, %42 : vector<8x256xf32>
    %c0_34 = arith.constant 0 : index
    %c0_35 = arith.constant 0 : index
    %44 = vector.load %arg5[%c0_34, %c0_35] : memref<8x1xf32, #tpu.memory_space<vmem>>, vector<8x1xf32>
    %45 = vector.broadcast %44 : vector<8x1xf32> to vector<8x256xf32>
    %46 = arith.addf %43, %45 : vector<8x256xf32>
    %cst_36 = arith.constant 0.000000e+00 : f32
    %47 = vector.broadcast %cst_36 : f32 to vector<8x256xf32>
    %48 = arith.maximumf %46, %47 : vector<8x256xf32>
    %c0_37 = arith.constant 0 : index
    %c0_38 = arith.constant 0 : index
    %c0_39 = arith.constant 0 : index
    %49 = vector.load %arg6[%c0_37, %c0_38, %c0_39] : memref<1x8x256xf32, #tpu.memory_space<vmem>>, vector<1x8x256xf32>
    %50 = vector.shape_cast %49 : vector<1x8x256xf32> to vector<8x256xf32>
    %51 = vector.shape_cast %48 : vector<8x256xf32> to vector<1x8x256xf32>
    tpu.vector_store %arg6[%c0_37, %c0_38, %c0_39], %51 {strides = array<i32>} : memref<1x8x256xf32, #tpu.memory_space<vmem>>, vector<1x8x256xf32>,
    return
  }
  func.func @transform_0(%arg0: i32, %arg1: i32) -> (i32, i32, i32, i32) {
    %c0_i32 = arith.constant 0 : i32
    %c0_i32_0 = arith.constant 0 : i32
    %c0_i32_1 = arith.constant 0 : i32
    %c0_i32_2 = arith.constant 0 : i32
    return %arg0, %c0_i32, %c0_i32_0, %c0_i32_1 : i32, i32, i32, i32
  }
  func.func @transform_1(%arg0: i32, %arg1: i32) -> (i32, i32) {
    %c0_i32 = arith.constant 0 : i32
    %c0_i32_0 = arith.constant 0 : i32
    %c0_i32_1 = arith.constant 0 : i32
    return %c0_i32, %c0_i32_0 : i32, i32
  }
  func.func @transform_2(%arg0: i32, %arg1: i32) -> (i32, i32) {
    %c0_i32 = arith.constant 0 : i32
    %c0_i32_0 = arith.constant 0 : i32
    %c0_i32_1 = arith.constant 0 : i32
    return %c0_i32, %c0_i32_0 : i32, i32
  }
  func.func @transform_3(%arg0: i32, %arg1: i32) -> (i32, i32) {
    %c0_i32 = arith.constant 0 : i32
    %c0_i32_0 = arith.constant 0 : i32
    %c0_i32_1 = arith.constant 0 : i32
    return %c0_i32, %c0_i32_0 : i32, i32
  }
  func.func @transform_4(%arg0: i32, %arg1: i32) -> (i32, i32, i32) {
    %c0_i32 = arith.constant 0 : i32
    %c0_i32_0 = arith.constant 0 : i32
    return %arg0, %c0_i32, %arg1 : i32, i32, i32
  }
}

</mosaic_0001>

<llo_original>
// kernel: conv2d_block_forward.1
$region0: #{conv2d_block_forward.1}
  #allocation0 [shape = 'u32[]', space=smem, size = 0x4, offset = 0x4, fixed_abs, tag = 'smem constant byte address 0x4 - core index']
  #allocation1 [shape = 'u32[144,128]{1,0:T(1,128)}', space=vmem, size = 0x12000, scoped, tag = 'internal scratch']
  %s0 = inlined_call_operand.vmem [shape: f32[2,4,18,18], index: 0, kind: input, shape index: {}]
  %s1 = inlined_call_operand.vmem [shape: f32[8,36], index: 1, kind: input, shape index: {}]
  %s2 = inlined_call_operand.vmem [shape: f32[8,1], index: 2, kind: input, shape index: {}]
  %s3 = inlined_call_operand.vmem [shape: f32[8,1], index: 3, kind: input, shape index: {}]
  %s4 = inlined_call_operand.vmem [shape: f32[2,8,256], index: 4, kind: output, shape index: {}]
  %s5 = sld [smem:[#allocation0]]
  $region49: #{conv2d_block_forward.1} parent=0
    _
  %s7 = ssub.s32 1, %s5
  %s8 = scalar_select 0, %s7, %s5
  loop: start=0, step=1, limit=4
  $region2: #{conv2d_block_forward.1} parent=0 // loop_pre_header
    _
  $region3: #{conv2d_block_forward.1} parent=0 // loop_header
    %s10 = sphi 0, %s14
    %p11 = scmp.ge.s32.totalorder %s10, 4
    %s17 = sphi 0, %s29
    %s18 = sphi 0, %s25
    %s19 = sphi 0, %s17
    %s20 = sphi 0, %s18
    %s21 = sphi 0, %s19
    %s22 = sphi 0, %s20
    %s32 = sphi 0, %s34
    %s35 = sphi 0, %s32
    %s36 = sphi 0, %s35
    %s52 = sphi 0, %s36
    %s56 = sphi 0, %s56
    %s58 = sphi 0, %s56
    %s59 = sphi 0, %s58
    %s73 = sphi 0, %s59
    %s77 = sphi 0, %s77
    %s79 = sphi 0, %s77
    %s80 = sphi 0, %s79
    %s94 = sphi 0, %s80
    %s98 = sphi 0, %s98
    %s100 = sphi 0, %s98
    %s101 = sphi 0, %s100
    %s115 = sphi 0, %s101
    %s123 = sphi 0, %s125
    %s126 = sphi 0, %s123
    %s127 = sphi 0, %s126
    %s143 = sphi 0, %s127
  $region4: #{conv2d_block_forward.1} parent=0 // loop_header_branch
    %13 = sbr.rel (%p11) target = $region8
  $region5: #{conv2d_block_forward.1} parent=0 // loop_body
    %s15 = ssub.s32 %s10, 1
    %s16 = ssub.s32 %s10, 2
    %s23 = sadd.s32 1, %s18
    %p24 = scmp.ge.s32.totalorder %s23, 1
    %s25 = scalar_select %p24, 0, %s23
    %s26 = sadd.s32 1, %s17
    %s27 = scalar_select %p24, %s26, %s17
    %p28 = scmp.ge.s32.totalorder %s27, 2
    %s29 = scalar_select %p28, 0, %s27
    %s30 = ssub.s32 %s17, %s29
    %p31 = scmp.eq.s32.totalorder %s30, 0
    %s33 = sadd.s32 %s32, 1
    %s34 = scalar_select %p31, %s32, %s33
    %p37 = pneg %p31
    %p38 = scmp.eq.s32.totalorder %s10, 1
    %p39 = por %p37, %p38
    %p40 = scmp.ne.s32.totalorder %s32, %s35
    %p41 = scmp.eq.s32.totalorder %s10, 0
    %p42 = por %p40, %p41
    %p43 = scmp.ne.s32.totalorder %s32, %s35
    %p44 = scmp.eq.s32.totalorder %s15, 1
    %p45 = por %p43, %p44
    %p46 = scmp.ne.s32.totalorder %s35, %s36
    %p47 = scmp.eq.s32.totalorder %s15, 0
    %p48 = por %p46, %p47
    %p49 = scmp.ne.s32.totalorder %s35, %s36
    %p50 = scmp.eq.s32.totalorder %s16, 1
    %p51 = por %p49, %p50
    %p53 = scmp.ne.s32.totalorder %s36, %s52
    %p54 = scmp.eq.s32.totalorder %s16, 0
    %p55 = por %p53, %p54
    %s57 = sadd.s32 %s56, 1
    %p60 = scmp.eq.s32.totalorder %s10, 1
    %p61 = scmp.ne.s32.totalorder %s56, %s58
    %p62 = scmp.eq.s32.totalorder %s10, 0
    %p63 = por %p61, %p62
    %p64 = scmp.ne.s32.totalorder %s56, %s58
    %p65 = scmp.eq.s32.totalorder %s15, 1
    %p66 = por %p64, %p65
    %p67 = scmp.ne.s32.totalorder %s58, %s59
    %p68 = scmp.eq.s32.totalorder %s15, 0
    %p69 = por %p67, %p68
    %p70 = scmp.ne.s32.totalorder %s58, %s59
    %p71 = scmp.eq.s32.totalorder %s16, 1
    %p72 = por %p70, %p71
    %p74 = scmp.ne.s32.totalorder %s59, %s73
    %p75 = scmp.eq.s32.totalorder %s16, 0
    %p76 = por %p74, %p75
    %s78 = sadd.s32 %s77, 1
    %p81 = scmp.eq.s32.totalorder %s10, 1
    %p82 = scmp.ne.s32.totalorder %s77, %s79
    %p83 = scmp.eq.s32.totalorder %s10, 0
    %p84 = por %p82, %p83
    %p85 = scmp.ne.s32.totalorder %s77, %s79
    %p86 = scmp.eq.s32.totalorder %s15, 1
    %p87 = por %p85, %p86
    %p88 = scmp.ne.s32.totalorder %s79, %s80
    %p89 = scmp.eq.s32.totalorder %s15, 0
    %p90 = por %p88, %p89
    %p91 = scmp.ne.s32.totalorder %s79, %s80
    %p92 = scmp.eq.s32.totalorder %s16, 1
    %p93 = por %p91, %p92
    %p95 = scmp.ne.s32.totalorder %s80, %s94
    %p96 = scmp.eq.s32.totalorder %s16, 0
    %p97 = por %p95, %p96
    %s99 = sadd.s32 %s98, 1
    %p102 = scmp.eq.s32.totalorder %s10, 1
    %p103 = scmp.ne.s32.totalorder %s98, %s100
    %p104 = scmp.eq.s32.totalorder %s10, 0
    %p105 = por %p103, %p104
    %p106 = scmp.ne.s32.totalorder %s98, %s100
    %p107 = scmp.eq.s32.totalorder %s15, 1
    %p108 = por %p106, %p107
    %p109 = scmp.ne.s32.totalorder %s100, %s101
    %p110 = scmp.eq.s32.totalorder %s15, 0
    %p111 = por %p109, %p110
    %p112 = scmp.ne.s32.totalorder %s100, %s101
    %p113 = scmp.eq.s32.totalorder %s16, 1
    %p114 = por %p112, %p113
    %p116 = scmp.ne.s32.totalorder %s101, %s115
    %p117 = scmp.eq.s32.totalorder %s16, 0
    %p118 = por %p116, %p117
    %s119 = ssub.s32 %s17, %s29
    %s120 = ssub.s32 %s18, %s25
    %s121 = sor.u32 %s119, %s120
    %p122 = scmp.eq.s32.totalorder %s121, 0
    %s124 = sadd.s32 %s123, 1
    %s125 = scalar_select %p122, %s123, %s124
    %p128 = pneg %p122
    %p129 = scmp.eq.s32.totalorder %s10, 1
    %p130 = por %p128, %p129
    %p131 = scmp.ne.s32.totalorder %s123, %s126
    %p132 = scmp.eq.s32.totalorder %s10, 0
    %p133 = por %p131, %p132
    %p134 = scmp.ne.s32.totalorder %s123, %s126
    %p135 = scmp.eq.s32.totalorder %s15, 1
    %p136 = por %p134, %p135
    %p137 = scmp.ne.s32.totalorder %s126, %s127
    %p138 = scmp.eq.s32.totalorder %s15, 0
    %p139 = por %p137, %p138
    %p140 = scmp.ne.s32.totalorder %s126, %s127
    %p141 = scmp.eq.s32.totalorder %s16, 1
    %p142 = por %p140, %p141
    %p144 = scmp.ne.s32.totalorder %s127, %s143
    %p145 = scmp.eq.s32.totalorder %s16, 0
    %p146 = por %p144, %p145
    %p147 = scmp.le.s32.totalorder 1, %s10
    %p148 = scmp.lt.s32.totalorder %s10, 3
    %p149 = pnand %p147, %p148
    %p150 = pneg %p149
    // Predicated region
    $region9: #{conv2d_block_forward.1} parent=5 // pred_check
      _
    $region10: #{conv2d_block_forward.1} parent=5 // pred_check_branch
      %152 = sbr.rel (%p149) target = $region12
    $region11: #{conv2d_block_forward.1} parent=5 // pred_region
      %s153 = ssub.s32 %s10, 1
      // Predicated region
      $region13: #{conv2d_block_forward.1} parent=11 // pred_check
        %p154 = pneg %p69
      $region14: #{conv2d_block_forward.1} parent=11 // pred_check_branch
        %156 = sbr.rel (%p154) target = $region16
      $region15: #{conv2d_block_forward.1} parent=11 // pred_region
        _
      $region16: #{conv2d_block_forward.1} parent=11 // pred_fallthru
        _
      // Predicated region
      $region17: #{conv2d_block_forward.1} parent=11 // pred_check
        %p157 = pneg %p90
      $region18: #{conv2d_block_forward.1} parent=11 // pred_check_branch
        %159 = sbr.rel (%p157) target = $region20
      $region19: #{conv2d_block_forward.1} parent=11 // pred_region
        _
      $region20: #{conv2d_block_forward.1} parent=11 // pred_fallthru
        _
      // Predicated region
      $region21: #{conv2d_block_forward.1} parent=11 // pred_check
        %p160 = pneg %p111
      $region22: #{conv2d_block_forward.1} parent=11 // pred_check_branch
        %162 = sbr.rel (%p160) target = $region24
      $region23: #{conv2d_block_forward.1} parent=11 // pred_region
        _
      $region24: #{conv2d_block_forward.1} parent=11 // pred_fallthru
        _
    $region12: #{conv2d_block_forward.1} parent=5 // pred_fallthru
      _
    %p163 = scmp.lt.s32.totalorder %s10, 2
    // Predicated region
    $region25: #{conv2d_block_forward.1} parent=5 // pred_check
      %p164 = pneg %p163
    $region26: #{conv2d_block_forward.1} parent=5 // pred_check_branch
      %166 = sbr.rel (%p164) target = $region28
    $region27: #{conv2d_block_forward.1} parent=5 // pred_region
      // Predicated region
      $region29: #{conv2d_block_forward.1} parent=27 // pred_check
        %p167 = pneg %p42
      $region30: #{conv2d_block_forward.1} parent=27 // pred_check_branch
        %169 = sbr.rel (%p167) target = $region32
      $region31: #{conv2d_block_forward.1} parent=27 // pred_region
        %p170 = scmp.lt.s32.totalorder %s17, 1
        %s171 = scalar_select %p170, %s17, 1
        %s172 = smul.addr %s171, 12
        %s173 = smul.addr %s172, 8
        %s174 = scalar_lea.vmem %s0, %s173
      $region32: #{conv2d_block_forward.1} parent=27 // pred_fallthru
        _
    $region28: #{conv2d_block_forward.1} parent=5 // pred_fallthru
      _
    %p175 = scmp.le.s32.totalorder 1, %s10
    %p176 = scmp.lt.s32.totalorder %s10, 3
    %p177 = pnand %p175, %p176
    %p178 = pneg %p177
    // Predicated region
    $region33: #{conv2d_block_forward.1} parent=5 // pred_check
      _
    $region34: #{conv2d_block_forward.1} parent=5 // pred_check_branch
      %180 = sbr.rel (%p177) target = $region36
    $region35: #{conv2d_block_forward.1} parent=5 // pred_region
      %s181 = ssub.s32 %s10, 1
      %p182 = scmp.lt.s32.totalorder %s19, 1
      %s183 = scalar_select %p182, %s19, 1
      %s184 = smul.addr %s183, 12
      %s185 = smul.addr %s184, 8
      %s186 = scalar_lea.vmem %s0, %s185
      %p187 = pneg %p48
      %p188 = pneg %p45
      %p189 = pneg %p69
      %p190 = pneg %p66
      %p191 = pneg %p90
      %p192 = pneg %p87
      %p193 = pneg %p111
      %p194 = pneg %p108
      %p195 = pneg %p139
      %p196 = pneg %p136
      %s197 = smul.u32 2, %s20
      %p198 = scmp.lt.s32.totalorder %s19, 1
      %s199 = scalar_select %p198, %s19, 1
      %p200 = scmp.lt.s32.totalorder %s197, 1
      %s201 = scalar_select %p200, %s197, 1
      %s202 = smul.addr %s199, 2
      %s203 = sadd.s32 %s201, %s202
      %s204 = smul.addr %s203, 8
      %s205 = scalar_lea.vmem %s4, %s204
      %p206 = scmp.lt.s32.totalorder %s19, 1
      %s207 = scalar_select %p206, %s19, 1
      %s208 = smul.addr %s207, 12
      %s209 = smul.addr %s208, 8
      %s210 = scalar_lea.vmem %s0, %s209
      %s211 = smul.u32 2, %s20
      %p212 = scmp.lt.s32.totalorder %s19, 1
      %s213 = scalar_select %p212, %s19, 1
      %p214 = scmp.lt.s32.totalorder %s211, 1
      %s215 = scalar_select %p214, %s211, 1
      %s216 = smul.addr %s213, 2
      %s217 = sadd.s32 %s215, %s216
      %s218 = smul.addr %s217, 8
      %s219 = scalar_lea.vmem %s4, %s218
      %s220 = smul.u32 2, %s20
      %s221 = smul.u32 %s20, 16
      %s222 = scalar_lea.vmem %s210, %s221
      %v223 = vld [vmem:[%s222] sm:$0xff]
      %v224 = vld [vmem:[%s222 + $0x8] sm:$0xff]
      %v225 = vld [vmem:[%s222 + $0x18] sm:$0xff]
      %v226 = vld [vmem:[%s222 + $0x20] sm:$0xff]
      %v227 = vld [vmem:[%s222 + $0x30] sm:$0xff]
      %v228 = vld [vmem:[%s222 + $0x38] sm:$0xff]
      %v229 = vld [vmem:[%s222 + $0x48] sm:$0xff]
      %v230 = vld [vmem:[%s222 + $0x50] sm:$0xff]
      %s231 = sadd.s32 %s221, 1
      %s232 = scalar_lea.vmem %s210, %s231
      %v233 = vld [vmem:[%s232] sm:$0xff]
      %v234 = vld [vmem:[%s232 + $0x8] sm:$0xff]
      %v235 = vld [vmem:[%s232 + $0x18] sm:$0xff]
      %v236 = vld [vmem:[%s232 + $0x20] sm:$0xff]
      %v237 = vld [vmem:[%s232 + $0x30] sm:$0xff]
      %v238 = vld [vmem:[%s232 + $0x38] sm:$0xff]
      %v239 = vld [vmem:[%s232 + $0x48] sm:$0xff]
      %v240 = vld [vmem:[%s232 + $0x50] sm:$0xff]
      %s241 = sadd.s32 %s221, 2
      %s242 = scalar_lea.vmem %s210, %s241
      %v243 = vld [vmem:[%s242] sm:$0xff]
      %v244 = vld [vmem:[%s242 + $0x8] sm:$0xff]
      %v245 = vld [vmem:[%s242 + $0x18] sm:$0xff]
      %v246 = vld [vmem:[%s242 + $0x20] sm:$0xff]
      %v247 = vld [vmem:[%s242 + $0x30] sm:$0xff]
      %v248 = vld [vmem:[%s242 + $0x38] sm:$0xff]
      %v249 = vld [vmem:[%s242 + $0x48] sm:$0xff]
      %v250 = vld [vmem:[%s242 + $0x50] sm:$0xff]
      %259 = vrot.lane.b32.xlu0 %v223, 127
      %v260 = vpop.permute.xlu0 %259
      %261 = vrot.lane.b32.xlu0 %v224, 127
      %v262 = vpop.permute.xlu0 %261
      %263 = vrot.lane.b32.xlu0 %v225, 127
      %v264 = vpop.permute.xlu0 %263
      %265 = vrot.lane.b32.xlu0 %v226, 127
      %v266 = vpop.permute.xlu0 %265
      %267 = vrot.lane.b32.xlu0 %v227, 127
      %v268 = vpop.permute.xlu0 %267
      %269 = vrot.lane.b32.xlu0 %v228, 127
      %v270 = vpop.permute.xlu0 %269
      %271 = vrot.lane.b32.xlu0 %v229, 127
      %v272 = vpop.permute.xlu0 %271
      %273 = vrot.lane.b32.xlu0 %v230, 127
      %v274 = vpop.permute.xlu0 %273
      %283 = vrot.lane.b32.xlu0 %v223, 126
      %v284 = vpop.permute.xlu0 %283
      %285 = vrot.lane.b32.xlu0 %v224, 126
      %v286 = vpop.permute.xlu0 %285
      %287 = vrot.lane.b32.xlu0 %v225, 126
      %v288 = vpop.permute.xlu0 %287
      %289 = vrot.lane.b32.xlu0 %v226, 126
      %v290 = vpop.permute.xlu0 %289
      %291 = vrot.lane.b32.xlu0 %v227, 126
      %v292 = vpop.permute.xlu0 %291
      %293 = vrot.lane.b32.xlu0 %v228, 126
      %v294 = vpop.permute.xlu0 %293
      %295 = vrot.lane.b32.xlu0 %v229, 126
      %v296 = vpop.permute.xlu0 %295
      %297 = vrot.lane.b32.xlu0 %v230, 126
      %v298 = vpop.permute.xlu0 %297
      %315 = vrot.lane.b32.xlu0 %v233, 127
      %v316 = vpop.permute.xlu0 %315
      %317 = vrot.lane.b32.xlu0 %v234, 127
      %v318 = vpop.permute.xlu0 %317
      %319 = vrot.lane.b32.xlu0 %v235, 127
      %v320 = vpop.permute.xlu0 %319
      %321 = vrot.lane.b32.xlu0 %v236, 127
      %v322 = vpop.permute.xlu0 %321
      %323 = vrot.lane.b32.xlu0 %v237, 127
      %v324 = vpop.permute.xlu0 %323
      %325 = vrot.lane.b32.xlu0 %v238, 127
      %v326 = vpop.permute.xlu0 %325
      %327 = vrot.lane.b32.xlu0 %v239, 127
      %v328 = vpop.permute.xlu0 %327
      %329 = vrot.lane.b32.xlu0 %v240, 127
      %v330 = vpop.permute.xlu0 %329
      %339 = vrot.lane.b32.xlu0 %v233, 126
      %v340 = vpop.permute.xlu0 %339
      %341 = vrot.lane.b32.xlu0 %v234, 126
      %v342 = vpop.permute.xlu0 %341
      %343 = vrot.lane.b32.xlu0 %v235, 126
      %v344 = vpop.permute.xlu0 %343
      %345 = vrot.lane.b32.xlu0 %v236, 126
      %v346 = vpop.permute.xlu0 %345
      %347 = vrot.lane.b32.xlu0 %v237, 126
      %v348 = vpop.permute.xlu0 %347
      %349 = vrot.lane.b32.xlu0 %v238, 126
      %v350 = vpop.permute.xlu0 %349
      %351 = vrot.lane.b32.xlu0 %v239, 126
      %v352 = vpop.permute.xlu0 %351
      %353 = vrot.lane.b32.xlu0 %v240, 126
      %v354 = vpop.permute.xlu0 %353
      %371 = vrot.lane.b32.xlu0 %v243, 127
      %v372 = vpop.permute.xlu0 %371
      %373 = vrot.lane.b32.xlu0 %v244, 127
      %v374 = vpop.permute.xlu0 %373
      %375 = vrot.lane.b32.xlu0 %v245, 127
      %v376 = vpop.permute.xlu0 %375
      %377 = vrot.lane.b32.xlu0 %v246, 127
      %v378 = vpop.permute.xlu0 %377
      %379 = vrot.lane.b32.xlu0 %v247, 127
      %v380 = vpop.permute.xlu0 %379
      %381 = vrot.lane.b32.xlu0 %v248, 127
      %v382 = vpop.permute.xlu0 %381
      %383 = vrot.lane.b32.xlu0 %v249, 127
      %v384 = vpop.permute.xlu0 %383
      %385 = vrot.lane.b32.xlu0 %v250, 127
      %v386 = vpop.permute.xlu0 %385
      %395 = vrot.lane.b32.xlu0 %v243, 126
      %v396 = vpop.permute.xlu0 %395
      %397 = vrot.lane.b32.xlu0 %v244, 126
      %v398 = vpop.permute.xlu0 %397
      %399 = vrot.lane.b32.xlu0 %v245, 126
      %v400 = vpop.permute.xlu0 %399
      %401 = vrot.lane.b32.xlu0 %v246, 126
      %v402 = vpop.permute.xlu0 %401
      %403 = vrot.lane.b32.xlu0 %v247, 126
      %v404 = vpop.permute.xlu0 %403
      %405 = vrot.lane.b32.xlu0 %v248, 126
      %v406 = vpop.permute.xlu0 %405
      %407 = vrot.lane.b32.xlu0 %v249, 126
      %v408 = vpop.permute.xlu0 %407
      %409 = vrot.lane.b32.xlu0 %v250, 126
      %v410 = vpop.permute.xlu0 %409
      %v419 = vcombine.low %v223, %v227
      %v420 = vcombine.high %v223, %v227
      %v422 = vunpack.c.l.s4 1983009808
      %v423 = vunpack.c.0.s8 %v422
      %v424 = vlaneseq
      %v425 = vshrl.u32 %v424, 7
      %v426 = vsub.s32 %v423, %v425
      %v427 = vrot.slane %v419, %v426
      %v429 = vunpack.c.l.s4 1983009808
      %v430 = vunpack.c.0.s8 %v429
      %v431 = vlaneseq
      %v432 = vshrl.u32 %v431, 7
      %v433 = vsub.s32 %v430, %v432
      %v434 = vrot.slane %v420, %v433
      %v435 = vcombine.low %v225, %v229
      %v436 = vcombine.high %v225, %v229
      %v438 = vunpack.c.l.s4 1983009808
      %v439 = vunpack.c.0.s8 %v438
      %v440 = vlaneseq
      %v441 = vshrl.u32 %v440, 7
      %v442 = vsub.s32 %v439, %v441
      %v443 = vrot.slane %v435, %v442
      %v445 = vunpack.c.l.s4 1983009808
      %v446 = vunpack.c.0.s8 %v445
      %v447 = vlaneseq
      %v448 = vshrl.u32 %v447, 7
      %v449 = vsub.s32 %v446, %v448
      %v450 = vrot.slane %v436, %v449
      %v451 = vcombine.low %v260, %v268
      %v452 = vcombine.high %v260, %v268
      %v454 = vunpack.c.l.s4 1983009808
      %v455 = vunpack.c.0.s8 %v454
      %v456 = vlaneseq
      %v457 = vshrl.u32 %v456, 7
      %v458 = vsub.s32 %v455, %v457
      %v459 = vrot.slane %v451, %v458
      %v461 = vunpack.c.l.s4 1983009808
      %v462 = vunpack.c.0.s8 %v461
      %v463 = vlaneseq
      %v464 = vshrl.u32 %v463, 7
      %v465 = vsub.s32 %v462, %v464
      %v466 = vrot.slane %v452, %v465
      %v467 = vcombine.low %v264, %v272
      %v468 = vcombine.high %v264, %v272
      %v470 = vunpack.c.l.s4 1983009808
      %v471 = vunpack.c.0.s8 %v470
      %v472 = vlaneseq
      %v473 = vshrl.u32 %v472, 7
      %v474 = vsub.s32 %v471, %v473
      %v475 = vrot.slane %v467, %v474
      %v477 = vunpack.c.l.s4 1983009808
      %v478 = vunpack.c.0.s8 %v477
      %v479 = vlaneseq
      %v480 = vshrl.u32 %v479, 7
      %v481 = vsub.s32 %v478, %v480
      %v482 = vrot.slane %v468, %v481
      %v483 = vcombine.low %v427, %v443
      %v484 = vcombine.high %v427, %v443
      %v486 = vunpack.c.l.s4 1934713408
      %v487 = vunpack.c.0.s8 %v486
      %v488 = vlaneseq
      %v489 = vshrl.u32 %v488, 7
      %v490 = vsub.s32 %v487, %v489
      %v491 = vrot.slane %v483, %v490
      %v493 = vunpack.c.l.s4 1934713408
      %v494 = vunpack.c.0.s8 %v493
      %v495 = vlaneseq
      %v496 = vshrl.u32 %v495, 7
      %v497 = vsub.s32 %v494, %v496
      %v498 = vrot.slane %v484, %v497
      %v499 = vcombine.low %v434, %v450
      %v500 = vcombine.high %v434, %v450
      %v502 = vunpack.c.l.s4 1934713408
      %v503 = vunpack.c.0.s8 %v502
      %v504 = vlaneseq
      %v505 = vshrl.u32 %v504, 7
      %v506 = vsub.s32 %v503, %v505
      %v507 = vrot.slane %v499, %v506
      %v509 = vunpack.c.l.s4 1934713408
      %v510 = vunpack.c.0.s8 %v509
      %v511 = vlaneseq
      %v512 = vshrl.u32 %v511, 7
      %v513 = vsub.s32 %v510, %v512
      %v514 = vrot.slane %v500, %v513
      %v515 = vcombine.low %v459, %v475
      %v516 = vcombine.high %v459, %v475
      %v518 = vunpack.c.l.s4 1934713408
      %v519 = vunpack.c.0.s8 %v518
      %v520 = vlaneseq
      %v521 = vshrl.u32 %v520, 7
      %v522 = vsub.s32 %v519, %v521
      %v523 = vrot.slane %v515, %v522
      %v525 = vunpack.c.l.s4 1934713408
      %v526 = vunpack.c.0.s8 %v525
      %v527 = vlaneseq
      %v528 = vshrl.u32 %v527, 7
      %v529 = vsub.s32 %v526, %v528
      %v530 = vrot.slane %v516, %v529
      %v531 = vcombine.low %v466, %v482
      %v532 = vcombine.high %v466, %v482
      %v534 = vunpack.c.l.s4 1934713408
      %v535 = vunpack.c.0.s8 %v534
      %v536 = vlaneseq
      %v537 = vshrl.u32 %v536, 7
      %v538 = vsub.s32 %v535, %v537
      %v539 = vrot.slane %v531, %v538
      %v541 = vunpack.c.l.s4 1934713408
      %v542 = vunpack.c.0.s8 %v541
      %v543 = vlaneseq
      %v544 = vshrl.u32 %v543, 7
      %v545 = vsub.s32 %v542, %v544
      %v546 = vrot.slane %v532, %v545
      %v547 = vcombine.low %v491, %v523
      %v548 = vcombine.high %v491, %v523
      %v549 = vcombine.low %v498, %v530
      %v550 = vcombine.high %v498, %v530
      %v551 = vcombine.low %v507, %v539
      %v552 = vcombine.high %v507, %v539
      %v553 = vcombine.low %v514, %v546
      %v554 = vcombine.high %v514, %v546
      %v555 = vcombine.low %v284, %v292
      %v556 = vcombine.high %v284, %v292
      %v558 = vunpack.c.l.s4 1983009808
      %v559 = vunpack.c.0.s8 %v558
      %v560 = vlaneseq
      %v561 = vshrl.u32 %v560, 7
      %v562 = vsub.s32 %v559, %v561
      %v563 = vrot.slane %v555, %v562
      %v565 = vunpack.c.l.s4 1983009808
      %v566 = vunpack.c.0.s8 %v565
      %v567 = vlaneseq
      %v568 = vshrl.u32 %v567, 7
      %v569 = vsub.s32 %v566, %v568
      %v570 = vrot.slane %v556, %v569
      %v571 = vcombine.low %v288, %v296
      %v572 = vcombine.high %v288, %v296
      %v574 = vunpack.c.l.s4 1983009808
      %v575 = vunpack.c.0.s8 %v574
      %v576 = vlaneseq
      %v577 = vshrl.u32 %v576, 7
      %v578 = vsub.s32 %v575, %v577
      %v579 = vrot.slane %v571, %v578
      %v581 = vunpack.c.l.s4 1983009808
      %v582 = vunpack.c.0.s8 %v581
      %v583 = vlaneseq
      %v584 = vshrl.u32 %v583, 7
      %v585 = vsub.s32 %v582, %v584
      %v586 = vrot.slane %v572, %v585
      %v587 = vcombine.low %v233, %v237
      %v588 = vcombine.high %v233, %v237
      %v590 = vunpack.c.l.s4 1983009808
      %v591 = vunpack.c.0.s8 %v590
      %v592 = vlaneseq
      %v593 = vshrl.u32 %v592, 7
      %v594 = vsub.s32 %v591, %v593
      %v595 = vrot.slane %v587, %v594
      %v597 = vunpack.c.l.s4 1983009808
      %v598 = vunpack.c.0.s8 %v597
      %v599 = vlaneseq
      %v600 = vshrl.u32 %v599, 7
      %v601 = vsub.s32 %v598, %v600
      %v602 = vrot.slane %v588, %v601
      %v603 = vcombine.low %v235, %v239
      %v604 = vcombine.high %v235, %v239
      %v606 = vunpack.c.l.s4 1983009808
      %v607 = vunpack.c.0.s8 %v606
      %v608 = vlaneseq
      %v609 = vshrl.u32 %v608, 7
      %v610 = vsub.s32 %v607, %v609
      %v611 = vrot.slane %v603, %v610
      %v613 = vunpack.c.l.s4 1983009808
      %v614 = vunpack.c.0.s8 %v613
      %v615 = vlaneseq
      %v616 = vshrl.u32 %v615, 7
      %v617 = vsub.s32 %v614, %v616
      %v618 = vrot.slane %v604, %v617
      %v619 = vcombine.low %v563, %v579
      %v620 = vcombine.high %v563, %v579
      %v622 = vunpack.c.l.s4 1934713408
      %v623 = vunpack.c.0.s8 %v622
      %v624 = vlaneseq
      %v625 = vshrl.u32 %v624, 7
      %v626 = vsub.s32 %v623, %v625
      %v627 = vrot.slane %v619, %v626
      %v629 = vunpack.c.l.s4 1934713408
      %v630 = vunpack.c.0.s8 %v629
      %v631 = vlaneseq
      %v632 = vshrl.u32 %v631, 7
      %v633 = vsub.s32 %v630, %v632
      %v634 = vrot.slane %v620, %v633
      %v635 = vcombine.low %v570, %v586
      %v636 = vcombine.high %v570, %v586
      %v638 = vunpack.c.l.s4 1934713408
      %v639 = vunpack.c.0.s8 %v638
      %v640 = vlaneseq
      %v641 = vshrl.u32 %v640, 7
      %v642 = vsub.s32 %v639, %v641
      %v643 = vrot.slane %v635, %v642
      %v645 = vunpack.c.l.s4 1934713408
      %v646 = vunpack.c.0.s8 %v645
      %v647 = vlaneseq
      %v648 = vshrl.u32 %v647, 7
      %v649 = vsub.s32 %v646, %v648
      %v650 = vrot.slane %v636, %v649
      %v651 = vcombine.low %v595, %v611
      %v652 = vcombine.high %v595, %v611
      %v654 = vunpack.c.l.s4 1934713408
      %v655 = vunpack.c.0.s8 %v654
      %v656 = vlaneseq
      %v657 = vshrl.u32 %v656, 7
      %v658 = vsub.s32 %v655, %v657
      %v659 = vrot.slane %v651, %v658
      %v661 = vunpack.c.l.s4 1934713408
      %v662 = vunpack.c.0.s8 %v661
      %v663 = vlaneseq
      %v664 = vshrl.u32 %v663, 7
      %v665 = vsub.s32 %v662, %v664
      %v666 = vrot.slane %v652, %v665
      %v667 = vcombine.low %v602, %v618
      %v668 = vcombine.high %v602, %v618
      %v670 = vunpack.c.l.s4 1934713408
      %v671 = vunpack.c.0.s8 %v670
      %v672 = vlaneseq
      %v673 = vshrl.u32 %v672, 7
      %v674 = vsub.s32 %v671, %v673
      %v675 = vrot.slane %v667, %v674
      %v677 = vunpack.c.l.s4 1934713408
      %v678 = vunpack.c.0.s8 %v677
      %v679 = vlaneseq
      %v680 = vshrl.u32 %v679, 7
      %v681 = vsub.s32 %v678, %v680
      %v682 = vrot.slane %v668, %v681
      %v683 = vcombine.low %v627, %v659
      %v684 = vcombine.high %v627, %v659
      %v685 = vcombine.low %v634, %v666
      %v686 = vcombine.high %v634, %v666
      %v687 = vcombine.low %v643, %v675
      %v688 = vcombine.high %v643, %v675
      %v689 = vcombine.low %v650, %v682
      %v690 = vcombine.high %v650, %v682
      %v691 = vcombine.low %v316, %v324
      %v692 = vcombine.high %v316, %v324
      %v694 = vunpack.c.l.s4 1983009808
      %v695 = vunpack.c.0.s8 %v694
      %v696 = vlaneseq
      %v697 = vshrl.u32 %v696, 7
      %v698 = vsub.s32 %v695, %v697
      %v699 = vrot.slane %v691, %v698
      %v701 = vunpack.c.l.s4 1983009808
      %v702 = vunpack.c.0.s8 %v701
      %v703 = vlaneseq
      %v704 = vshrl.u32 %v703, 7
      %v705 = vsub.s32 %v702, %v704
      %v706 = vrot.slane %v692, %v705
      %v707 = vcombine.low %v320, %v328
      %v708 = vcombine.high %v320, %v328
      %v710 = vunpack.c.l.s4 1983009808
      %v711 = vunpack.c.0.s8 %v710
      %v712 = vlaneseq
      %v713 = vshrl.u32 %v712, 7
      %v714 = vsub.s32 %v711, %v713
      %v715 = vrot.slane %v707, %v714
      %v717 = vunpack.c.l.s4 1983009808
      %v718 = vunpack.c.0.s8 %v717
      %v719 = vlaneseq
      %v720 = vshrl.u32 %v719, 7
      %v721 = vsub.s32 %v718, %v720
      %v722 = vrot.slane %v708, %v721
      %v723 = vcombine.low %v340, %v348
      %v724 = vcombine.high %v340, %v348
      %v726 = vunpack.c.l.s4 1983009808
      %v727 = vunpack.c.0.s8 %v726
      %v728 = vlaneseq
      %v729 = vshrl.u32 %v728, 7
      %v730 = vsub.s32 %v727, %v729
      %v731 = vrot.slane %v723, %v730
      %v733 = vunpack.c.l.s4 1983009808
      %v734 = vunpack.c.0.s8 %v733
      %v735 = vlaneseq
      %v736 = vshrl.u32 %v735, 7
      %v737 = vsub.s32 %v734, %v736
      %v738 = vrot.slane %v724, %v737
      %v739 = vcombine.low %v344, %v352
      %v740 = vcombine.high %v344, %v352
      %v742 = vunpack.c.l.s4 1983009808
      %v743 = vunpack.c.0.s8 %v742
      %v744 = vlaneseq
      %v745 = vshrl.u32 %v744, 7
      %v746 = vsub.s32 %v743, %v745
      %v747 = vrot.slane %v739, %v746
      %v749 = vunpack.c.l.s4 1983009808
      %v750 = vunpack.c.0.s8 %v749
      %v751 = vlaneseq
      %v752 = vshrl.u32 %v751, 7
      %v753 = vsub.s32 %v750, %v752
      %v754 = vrot.slane %v740, %v753
      %v755 = vcombine.low %v699, %v715
      %v756 = vcombine.high %v699, %v715
      %v758 = vunpack.c.l.s4 1934713408
      %v759 = vunpack.c.0.s8 %v758
      %v760 = vlaneseq
      %v761 = vshrl.u32 %v760, 7
      %v762 = vsub.s32 %v759, %v761
      %v763 = vrot.slane %v755, %v762
      %v765 = vunpack.c.l.s4 1934713408
      %v766 = vunpack.c.0.s8 %v765
      %v767 = vlaneseq
      %v768 = vshrl.u32 %v767, 7
      %v769 = vsub.s32 %v766, %v768
      %v770 = vrot.slane %v756, %v769
      %v771 = vcombine.low %v706, %v722
      %v772 = vcombine.high %v706, %v722
      %v774 = vunpack.c.l.s4 1934713408
      %v775 = vunpack.c.0.s8 %v774
      %v776 = vlaneseq
      %v777 = vshrl.u32 %v776, 7
      %v778 = vsub.s32 %v775, %v777
      %v779 = vrot.slane %v771, %v778
      %v781 = vunpack.c.l.s4 1934713408
      %v782 = vunpack.c.0.s8 %v781
      %v783 = vlaneseq
      %v784 = vshrl.u32 %v783, 7
      %v785 = vsub.s32 %v782, %v784
      %v786 = vrot.slane %v772, %v785
      %v787 = vcombine.low %v731, %v747
      %v788 = vcombine.high %v731, %v747
      %v790 = vunpack.c.l.s4 1934713408
      %v791 = vunpack.c.0.s8 %v790
      %v792 = vlaneseq
      %v793 = vshrl.u32 %v792, 7
      %v794 = vsub.s32 %v791, %v793
      %v795 = vrot.slane %v787, %v794
      %v797 = vunpack.c.l.s4 1934713408
      %v798 = vunpack.c.0.s8 %v797
      %v799 = vlaneseq
      %v800 = vshrl.u32 %v799, 7
      %v801 = vsub.s32 %v798, %v800
      %v802 = vrot.slane %v788, %v801
      %v803 = vcombine.low %v738, %v754
      %v804 = vcombine.high %v738, %v754
      %v806 = vunpack.c.l.s4 1934713408
      %v807 = vunpack.c.0.s8 %v806
      %v808 = vlaneseq
      %v809 = vshrl.u32 %v808, 7
      %v810 = vsub.s32 %v807, %v809
      %v811 = vrot.slane %v803, %v810
      %v813 = vunpack.c.l.s4 1934713408
      %v814 = vunpack.c.0.s8 %v813
      %v815 = vlaneseq
      %v816 = vshrl.u32 %v815, 7
      %v817 = vsub.s32 %v814, %v816
      %v818 = vrot.slane %v804, %v817
      %v819 = vcombine.low %v763, %v795
      %v820 = vcombine.high %v763, %v795
      %v821 = vcombine.low %v770, %v802
      %v822 = vcombine.high %v770, %v802
      %v823 = vcombine.low %v779, %v811
      %v824 = vcombine.high %v779, %v811
      %v825 = vcombine.low %v786, %v818
      %v826 = vcombine.high %v786, %v818
      %v827 = vcombine.low %v243, %v247
      %v828 = vcombine.high %v243, %v247
      %v830 = vunpack.c.l.s4 1983009808
      %v831 = vunpack.c.0.s8 %v830
      %v832 = vlaneseq
      %v833 = vshrl.u32 %v832, 7
      %v834 = vsub.s32 %v831, %v833
      %v835 = vrot.slane %v827, %v834
      %v837 = vunpack.c.l.s4 1983009808
      %v838 = vunpack.c.0.s8 %v837
      %v839 = vlaneseq
      %v840 = vshrl.u32 %v839, 7
      %v841 = vsub.s32 %v838, %v840
      %v842 = vrot.slane %v828, %v841
      %v843 = vcombine.low %v245, %v249
      %v844 = vcombine.high %v245, %v249
      %v846 = vunpack.c.l.s4 1983009808
      %v847 = vunpack.c.0.s8 %v846
      %v848 = vlaneseq
      %v849 = vshrl.u32 %v848, 7
      %v850 = vsub.s32 %v847, %v849
      %v851 = vrot.slane %v843, %v850
      %v853 = vunpack.c.l.s4 1983009808
      %v854 = vunpack.c.0.s8 %v853
      %v855 = vlaneseq
      %v856 = vshrl.u32 %v855, 7
      %v857 = vsub.s32 %v854, %v856
      %v858 = vrot.slane %v844, %v857
      %v859 = vcombine.low %v372, %v380
      %v860 = vcombine.high %v372, %v380
      %v862 = vunpack.c.l.s4 1983009808
      %v863 = vunpack.c.0.s8 %v862
      %v864 = vlaneseq
      %v865 = vshrl.u32 %v864, 7
      %v866 = vsub.s32 %v863, %v865
      %v867 = vrot.slane %v859, %v866
      %v869 = vunpack.c.l.s4 1983009808
      %v870 = vunpack.c.0.s8 %v869
      %v871 = vlaneseq
      %v872 = vshrl.u32 %v871, 7
      %v873 = vsub.s32 %v870, %v872
      %v874 = vrot.slane %v860, %v873
      %v875 = vcombine.low %v376, %v384
      %v876 = vcombine.high %v376, %v384
      %v878 = vunpack.c.l.s4 1983009808
      %v879 = vunpack.c.0.s8 %v878
      %v880 = vlaneseq
      %v881 = vshrl.u32 %v880, 7
      %v882 = vsub.s32 %v879, %v881
      %v883 = vrot.slane %v875, %v882
      %v885 = vunpack.c.l.s4 1983009808
      %v886 = vunpack.c.0.s8 %v885
      %v887 = vlaneseq
      %v888 = vshrl.u32 %v887, 7
      %v889 = vsub.s32 %v886, %v888
      %v890 = vrot.slane %v876, %v889
      %v891 = vcombine.low %v835, %v851
      %v892 = vcombine.high %v835, %v851
      %v894 = vunpack.c.l.s4 1934713408
      %v895 = vunpack.c.0.s8 %v894
      %v896 = vlaneseq
      %v897 = vshrl.u32 %v896, 7
      %v898 = vsub.s32 %v895, %v897
      %v899 = vrot.slane %v891, %v898
      %v901 = vunpack.c.l.s4 1934713408
      %v902 = vunpack.c.0.s8 %v901
      %v903 = vlaneseq
      %v904 = vshrl.u32 %v903, 7
      %v905 = vsub.s32 %v902, %v904
      %v906 = vrot.slane %v892, %v905
      %v907 = vcombine.low %v842, %v858
      %v908 = vcombine.high %v842, %v858
      %v910 = vunpack.c.l.s4 1934713408
      %v911 = vunpack.c.0.s8 %v910
      %v912 = vlaneseq
      %v913 = vshrl.u32 %v912, 7
      %v914 = vsub.s32 %v911, %v913
      %v915 = vrot.slane %v907, %v914
      %v917 = vunpack.c.l.s4 1934713408
      %v918 = vunpack.c.0.s8 %v917
      %v919 = vlaneseq
      %v920 = vshrl.u32 %v919, 7
      %v921 = vsub.s32 %v918, %v920
      %v922 = vrot.slane %v908, %v921
      %v923 = vcombine.low %v867, %v883
      %v924 = vcombine.high %v867, %v883
      %v926 = vunpack.c.l.s4 1934713408
      %v927 = vunpack.c.0.s8 %v926
      %v928 = vlaneseq
      %v929 = vshrl.u32 %v928, 7
      %v930 = vsub.s32 %v927, %v929
      %v931 = vrot.slane %v923, %v930
      %v933 = vunpack.c.l.s4 1934713408
      %v934 = vunpack.c.0.s8 %v933
      %v935 = vlaneseq
      %v936 = vshrl.u32 %v935, 7
      %v937 = vsub.s32 %v934, %v936
      %v938 = vrot.slane %v924, %v937
      %v939 = vcombine.low %v874, %v890
      %v940 = vcombine.high %v874, %v890
      %v942 = vunpack.c.l.s4 1934713408
      %v943 = vunpack.c.0.s8 %v942
      %v944 = vlaneseq
      %v945 = vshrl.u32 %v944, 7
      %v946 = vsub.s32 %v943, %v945
      %v947 = vrot.slane %v939, %v946
      %v949 = vunpack.c.l.s4 1934713408
      %v950 = vunpack.c.0.s8 %v949
      %v951 = vlaneseq
      %v952 = vshrl.u32 %v951, 7
      %v953 = vsub.s32 %v950, %v952
      %v954 = vrot.slane %v940, %v953
      %v955 = vcombine.low %v899, %v931
      %v956 = vcombine.high %v899, %v931
      %v957 = vcombine.low %v906, %v938
      %v958 = vcombine.high %v906, %v938
      %v959 = vcombine.low %v915, %v947
      %v960 = vcombine.high %v915, %v947
      %v961 = vcombine.low %v922, %v954
      %v962 = vcombine.high %v922, %v954
      %v963 = vcombine.low %v396, %v404
      %v964 = vcombine.high %v396, %v404
      %v966 = vunpack.c.l.s4 1983009808
      %v967 = vunpack.c.0.s8 %v966
      %v968 = vlaneseq
      %v969 = vshrl.u32 %v968, 7
      %v970 = vsub.s32 %v967, %v969
      %v971 = vrot.slane %v963, %v970
      %v973 = vunpack.c.l.s4 1983009808
      %v974 = vunpack.c.0.s8 %v973
      %v975 = vlaneseq
      %v976 = vshrl.u32 %v975, 7
      %v977 = vsub.s32 %v974, %v976
      %v978 = vrot.slane %v964, %v977
      %v979 = vcombine.low %v400, %v408
      %v980 = vcombine.high %v400, %v408
      %v982 = vunpack.c.l.s4 1983009808
      %v983 = vunpack.c.0.s8 %v982
      %v984 = vlaneseq
      %v985 = vshrl.u32 %v984, 7
      %v986 = vsub.s32 %v983, %v985
      %v987 = vrot.slane %v979, %v986
      %v989 = vunpack.c.l.s4 1983009808
      %v990 = vunpack.c.0.s8 %v989
      %v991 = vlaneseq
      %v992 = vshrl.u32 %v991, 7
      %v993 = vsub.s32 %v990, %v992
      %v994 = vrot.slane %v980, %v993
      %v995 = vcombine.low %v971, %v987
      %v996 = vcombine.high %v971, %v987
      %v998 = vunpack.c.l.s4 1934713408
      %v999 = vunpack.c.0.s8 %v998
      %v1000 = vlaneseq
      %v1001 = vshrl.u32 %v1000, 7
      %v1002 = vsub.s32 %v999, %v1001
      %v1003 = vrot.slane %v995, %v1002
      %v1005 = vunpack.c.l.s4 1934713408
      %v1006 = vunpack.c.0.s8 %v1005
      %v1007 = vlaneseq
      %v1008 = vshrl.u32 %v1007, 7
      %v1009 = vsub.s32 %v1006, %v1008
      %v1010 = vrot.slane %v996, %v1009
      %v1011 = vcombine.low %v978, %v994
      %v1012 = vcombine.high %v978, %v994
      %v1014 = vunpack.c.l.s4 1934713408
      %v1015 = vunpack.c.0.s8 %v1014
      %v1016 = vlaneseq
      %v1017 = vshrl.u32 %v1016, 7
      %v1018 = vsub.s32 %v1015, %v1017
      %v1019 = vrot.slane %v1011, %v1018
      %v1021 = vunpack.c.l.s4 1934713408
      %v1022 = vunpack.c.0.s8 %v1021
      %v1023 = vlaneseq
      %v1024 = vshrl.u32 %v1023, 7
      %v1025 = vsub.s32 %v1022, %v1024
      %v1026 = vrot.slane %v1012, %v1025
      %v1027 = vcombine.high %v1003, 0.0
      %v1028 = vcombine.high %v1010, 0.0
      %v1029 = vcombine.high %v1019, 0.0
      %v1030 = vcombine.high %v1026, 0.0
      %v1031 = vcombine.low %v224, %v228
      %v1032 = vcombine.high %v224, %v228
      %v1034 = vunpack.c.l.s4 1983009808
      %v1035 = vunpack.c.0.s8 %v1034
      %v1036 = vlaneseq
      %v1037 = vshrl.u32 %v1036, 7
      %v1038 = vsub.s32 %v1035, %v1037
      %v1039 = vrot.slane %v1031, %v1038
      %v1041 = vunpack.c.l.s4 1983009808
      %v1042 = vunpack.c.0.s8 %v1041
      %v1043 = vlaneseq
      %v1044 = vshrl.u32 %v1043, 7
      %v1045 = vsub.s32 %v1042, %v1044
      %v1046 = vrot.slane %v1032, %v1045
      %v1047 = vcombine.low %v226, %v230
      %v1048 = vcombine.high %v226, %v230
      %v1050 = vunpack.c.l.s4 1983009808
      %v1051 = vunpack.c.0.s8 %v1050
      %v1052 = vlaneseq
      %v1053 = vshrl.u32 %v1052, 7
      %v1054 = vsub.s32 %v1051, %v1053
      %v1055 = vrot.slane %v1047, %v1054
      %v1057 = vunpack.c.l.s4 1983009808
      %v1058 = vunpack.c.0.s8 %v1057
      %v1059 = vlaneseq
      %v1060 = vshrl.u32 %v1059, 7
      %v1061 = vsub.s32 %v1058, %v1060
      %v1062 = vrot.slane %v1048, %v1061
      %v1063 = vcombine.low %v262, %v270
      %v1064 = vcombine.high %v262, %v270
      %v1066 = vunpack.c.l.s4 1983009808
      %v1067 = vunpack.c.0.s8 %v1066
      %v1068 = vlaneseq
      %v1069 = vshrl.u32 %v1068, 7
      %v1070 = vsub.s32 %v1067, %v1069
      %v1071 = vrot.slane %v1063, %v1070
      %v1073 = vunpack.c.l.s4 1983009808
      %v1074 = vunpack.c.0.s8 %v1073
      %v1075 = vlaneseq
      %v1076 = vshrl.u32 %v1075, 7
      %v1077 = vsub.s32 %v1074, %v1076
      %v1078 = vrot.slane %v1064, %v1077
      %v1079 = vcombine.low %v266, %v274
      %v1080 = vcombine.high %v266, %v274
      %v1082 = vunpack.c.l.s4 1983009808
      %v1083 = vunpack.c.0.s8 %v1082
      %v1084 = vlaneseq
      %v1085 = vshrl.u32 %v1084, 7
      %v1086 = vsub.s32 %v1083, %v1085
      %v1087 = vrot.slane %v1079, %v1086
      %v1089 = vunpack.c.l.s4 1983009808
      %v1090 = vunpack.c.0.s8 %v1089
      %v1091 = vlaneseq
      %v1092 = vshrl.u32 %v1091, 7
      %v1093 = vsub.s32 %v1090, %v1092
      %v1094 = vrot.slane %v1080, %v1093
      %v1095 = vcombine.low %v1039, %v1055
      %v1096 = vcombine.high %v1039, %v1055
      %v1098 = vunpack.c.l.s4 1934713408
      %v1099 = vunpack.c.0.s8 %v1098
      %v1100 = vlaneseq
      %v1101 = vshrl.u32 %v1100, 7
      %v1102 = vsub.s32 %v1099, %v1101
      %v1103 = vrot.slane %v1095, %v1102
      %v1105 = vunpack.c.l.s4 1934713408
      %v1106 = vunpack.c.0.s8 %v1105
      %v1107 = vlaneseq
      %v1108 = vshrl.u32 %v1107, 7
      %v1109 = vsub.s32 %v1106, %v1108
      %v1110 = vrot.slane %v1096, %v1109
      %v1111 = vcombine.low %v1046, %v1062
      %v1112 = vcombine.high %v1046, %v1062
      %v1114 = vunpack.c.l.s4 1934713408
      %v1115 = vunpack.c.0.s8 %v1114
      %v1116 = vlaneseq
      %v1117 = vshrl.u32 %v1116, 7
      %v1118 = vsub.s32 %v1115, %v1117
      %v1119 = vrot.slane %v1111, %v1118
      %v1121 = vunpack.c.l.s4 1934713408
      %v1122 = vunpack.c.0.s8 %v1121
      %v1123 = vlaneseq
      %v1124 = vshrl.u32 %v1123, 7
      %v1125 = vsub.s32 %v1122, %v1124
      %v1126 = vrot.slane %v1112, %v1125
      %v1127 = vcombine.low %v1071, %v1087
      %v1128 = vcombine.high %v1071, %v1087
      %v1130 = vunpack.c.l.s4 1934713408
      %v1131 = vunpack.c.0.s8 %v1130
      %v1132 = vlaneseq
      %v1133 = vshrl.u32 %v1132, 7
      %v1134 = vsub.s32 %v1131, %v1133
      %v1135 = vrot.slane %v1127, %v1134
      %v1137 = vunpack.c.l.s4 1934713408
      %v1138 = vunpack.c.0.s8 %v1137
      %v1139 = vlaneseq
      %v1140 = vshrl.u32 %v1139, 7
      %v1141 = vsub.s32 %v1138, %v1140
      %v1142 = vrot.slane %v1128, %v1141
      %v1143 = vcombine.low %v1078, %v1094
      %v1144 = vcombine.high %v1078, %v1094
      %v1146 = vunpack.c.l.s4 1934713408
      %v1147 = vunpack.c.0.s8 %v1146
      %v1148 = vlaneseq
      %v1149 = vshrl.u32 %v1148, 7
      %v1150 = vsub.s32 %v1147, %v1149
      %v1151 = vrot.slane %v1143, %v1150
      %v1153 = vunpack.c.l.s4 1934713408
      %v1154 = vunpack.c.0.s8 %v1153
      %v1155 = vlaneseq
      %v1156 = vshrl.u32 %v1155, 7
      %v1157 = vsub.s32 %v1154, %v1156
      %v1158 = vrot.slane %v1144, %v1157
      %v1159 = vcombine.low %v1103, %v1135
      %v1160 = vcombine.high %v1103, %v1135
      %v1161 = vcombine.low %v1110, %v1142
      %v1162 = vcombine.high %v1110, %v1142
      %v1163 = vcombine.low %v1119, %v1151
      %v1164 = vcombine.high %v1119, %v1151
      %v1165 = vcombine.low %v1126, %v1158
      %v1166 = vcombine.high %v1126, %v1158
      %v1167 = vcombine.low %v286, %v294
      %v1168 = vcombine.high %v286, %v294
      %v1170 = vunpack.c.l.s4 1983009808
      %v1171 = vunpack.c.0.s8 %v1170
      %v1172 = vlaneseq
      %v1173 = vshrl.u32 %v1172, 7
      %v1174 = vsub.s32 %v1171, %v1173
      %v1175 = vrot.slane %v1167, %v1174
      %v1177 = vunpack.c.l.s4 1983009808
      %v1178 = vunpack.c.0.s8 %v1177
      %v1179 = vlaneseq
      %v1180 = vshrl.u32 %v1179, 7
      %v1181 = vsub.s32 %v1178, %v1180
      %v1182 = vrot.slane %v1168, %v1181
      %v1183 = vcombine.low %v290, %v298
      %v1184 = vcombine.high %v290, %v298
      %v1186 = vunpack.c.l.s4 1983009808
      %v1187 = vunpack.c.0.s8 %v1186
      %v1188 = vlaneseq
      %v1189 = vshrl.u32 %v1188, 7
      %v1190 = vsub.s32 %v1187, %v1189
      %v1191 = vrot.slane %v1183, %v1190
      %v1193 = vunpack.c.l.s4 1983009808
      %v1194 = vunpack.c.0.s8 %v1193
      %v1195 = vlaneseq
      %v1196 = vshrl.u32 %v1195, 7
      %v1197 = vsub.s32 %v1194, %v1196
      %v1198 = vrot.slane %v1184, %v1197
      %v1199 = vcombine.low %v234, %v238
      %v1200 = vcombine.high %v234, %v238
      %v1202 = vunpack.c.l.s4 1983009808
      %v1203 = vunpack.c.0.s8 %v1202
      %v1204 = vlaneseq
      %v1205 = vshrl.u32 %v1204, 7
      %v1206 = vsub.s32 %v1203, %v1205
      %v1207 = vrot.slane %v1199, %v1206
      %v1209 = vunpack.c.l.s4 1983009808
      %v1210 = vunpack.c.0.s8 %v1209
      %v1211 = vlaneseq
      %v1212 = vshrl.u32 %v1211, 7
      %v1213 = vsub.s32 %v1210, %v1212
      %v1214 = vrot.slane %v1200, %v1213
      %v1215 = vcombine.low %v236, %v240
      %v1216 = vcombine.high %v236, %v240
      %v1218 = vunpack.c.l.s4 1983009808
      %v1219 = vunpack.c.0.s8 %v1218
      %v1220 = vlaneseq
      %v1221 = vshrl.u32 %v1220, 7
      %v1222 = vsub.s32 %v1219, %v1221
      %v1223 = vrot.slane %v1215, %v1222
      %v1225 = vunpack.c.l.s4 1983009808
      %v1226 = vunpack.c.0.s8 %v1225
      %v1227 = vlaneseq
      %v1228 = vshrl.u32 %v1227, 7
      %v1229 = vsub.s32 %v1226, %v1228
      %v1230 = vrot.slane %v1216, %v1229
      %v1231 = vcombine.low %v1175, %v1191
      %v1232 = vcombine.high %v1175, %v1191
      %v1234 = vunpack.c.l.s4 1934713408
      %v1235 = vunpack.c.0.s8 %v1234
      %v1236 = vlaneseq
      %v1237 = vshrl.u32 %v1236, 7
      %v1238 = vsub.s32 %v1235, %v1237
      %v1239 = vrot.slane %v1231, %v1238
      %v1241 = vunpack.c.l.s4 1934713408
      %v1242 = vunpack.c.0.s8 %v1241
      %v1243 = vlaneseq
      %v1244 = vshrl.u32 %v1243, 7
      %v1245 = vsub.s32 %v1242, %v1244
      %v1246 = vrot.slane %v1232, %v1245
      %v1247 = vcombine.low %v1182, %v1198
      %v1248 = vcombine.high %v1182, %v1198
      %v1250 = vunpack.c.l.s4 1934713408
      %v1251 = vunpack.c.0.s8 %v1250
      %v1252 = vlaneseq
      %v1253 = vshrl.u32 %v1252, 7
      %v1254 = vsub.s32 %v1251, %v1253
      %v1255 = vrot.slane %v1247, %v1254
      %v1257 = vunpack.c.l.s4 1934713408
      %v1258 = vunpack.c.0.s8 %v1257
      %v1259 = vlaneseq
      %v1260 = vshrl.u32 %v1259, 7
      %v1261 = vsub.s32 %v1258, %v1260
      %v1262 = vrot.slane %v1248, %v1261
      %v1263 = vcombine.low %v1207, %v1223
      %v1264 = vcombine.high %v1207, %v1223
      %v1266 = vunpack.c.l.s4 1934713408
      %v1267 = vunpack.c.0.s8 %v1266
      %v1268 = vlaneseq
      %v1269 = vshrl.u32 %v1268, 7
      %v1270 = vsub.s32 %v1267, %v1269
      %v1271 = vrot.slane %v1263, %v1270
      %v1273 = vunpack.c.l.s4 1934713408
      %v1274 = vunpack.c.0.s8 %v1273
      %v1275 = vlaneseq
      %v1276 = vshrl.u32 %v1275, 7
      %v1277 = vsub.s32 %v1274, %v1276
      %v1278 = vrot.slane %v1264, %v1277
      %v1279 = vcombine.low %v1214, %v1230
      %v1280 = vcombine.high %v1214, %v1230
      %v1282 = vunpack.c.l.s4 1934713408
      %v1283 = vunpack.c.0.s8 %v1282
      %v1284 = vlaneseq
      %v1285 = vshrl.u32 %v1284, 7
      %v1286 = vsub.s32 %v1283, %v1285
      %v1287 = vrot.slane %v1279, %v1286
      %v1289 = vunpack.c.l.s4 1934713408
      %v1290 = vunpack.c.0.s8 %v1289
      %v1291 = vlaneseq
      %v1292 = vshrl.u32 %v1291, 7
      %v1293 = vsub.s32 %v1290, %v1292
      %v1294 = vrot.slane %v1280, %v1293
      %v1295 = vcombine.low %v1239, %v1271
      %v1296 = vcombine.high %v1239, %v1271
      %v1297 = vcombine.low %v1246, %v1278
      %v1298 = vcombine.high %v1246, %v1278
      %v1299 = vcombine.low %v1255, %v1287
      %v1300 = vcombine.high %v1255, %v1287
      %v1301 = vcombine.low %v1262, %v1294
      %v1302 = vcombine.high %v1262, %v1294
      %v1303 = vcombine.low %v318, %v326
      %v1304 = vcombine.high %v318, %v326
      %v1306 = vunpack.c.l.s4 1983009808
      %v1307 = vunpack.c.0.s8 %v1306
      %v1308 = vlaneseq
      %v1309 = vshrl.u32 %v1308, 7
      %v1310 = vsub.s32 %v1307, %v1309
      %v1311 = vrot.slane %v1303, %v1310
      %v1313 = vunpack.c.l.s4 1983009808
      %v1314 = vunpack.c.0.s8 %v1313
      %v1315 = vlaneseq
      %v1316 = vshrl.u32 %v1315, 7
      %v1317 = vsub.s32 %v1314, %v1316
      %v1318 = vrot.slane %v1304, %v1317
      %v1319 = vcombine.low %v322, %v330
      %v1320 = vcombine.high %v322, %v330
      %v1322 = vunpack.c.l.s4 1983009808
      %v1323 = vunpack.c.0.s8 %v1322
      %v1324 = vlaneseq
      %v1325 = vshrl.u32 %v1324, 7
      %v1326 = vsub.s32 %v1323, %v1325
      %v1327 = vrot.slane %v1319, %v1326
      %v1329 = vunpack.c.l.s4 1983009808
      %v1330 = vunpack.c.0.s8 %v1329
      %v1331 = vlaneseq
      %v1332 = vshrl.u32 %v1331, 7
      %v1333 = vsub.s32 %v1330, %v1332
      %v1334 = vrot.slane %v1320, %v1333
      %v1335 = vcombine.low %v342, %v350
      %v1336 = vcombine.high %v342, %v350
      %v1338 = vunpack.c.l.s4 1983009808
      %v1339 = vunpack.c.0.s8 %v1338
      %v1340 = vlaneseq
      %v1341 = vshrl.u32 %v1340, 7
      %v1342 = vsub.s32 %v1339, %v1341
      %v1343 = vrot.slane %v1335, %v1342
      %v1345 = vunpack.c.l.s4 1983009808
      %v1346 = vunpack.c.0.s8 %v1345
      %v1347 = vlaneseq
      %v1348 = vshrl.u32 %v1347, 7
      %v1349 = vsub.s32 %v1346, %v1348
      %v1350 = vrot.slane %v1336, %v1349
      %v1351 = vcombine.low %v346, %v354
      %v1352 = vcombine.high %v346, %v354
      %v1354 = vunpack.c.l.s4 1983009808
      %v1355 = vunpack.c.0.s8 %v1354
      %v1356 = vlaneseq
      %v1357 = vshrl.u32 %v1356, 7
      %v1358 = vsub.s32 %v1355, %v1357
      %v1359 = vrot.slane %v1351, %v1358
      %v1361 = vunpack.c.l.s4 1983009808
      %v1362 = vunpack.c.0.s8 %v1361
      %v1363 = vlaneseq
      %v1364 = vshrl.u32 %v1363, 7
      %v1365 = vsub.s32 %v1362, %v1364
      %v1366 = vrot.slane %v1352, %v1365
      %v1367 = vcombine.low %v1311, %v1327
      %v1368 = vcombine.high %v1311, %v1327
      %v1370 = vunpack.c.l.s4 1934713408
      %v1371 = vunpack.c.0.s8 %v1370
      %v1372 = vlaneseq
      %v1373 = vshrl.u32 %v1372, 7
      %v1374 = vsub.s32 %v1371, %v1373
      %v1375 = vrot.slane %v1367, %v1374
      %v1377 = vunpack.c.l.s4 1934713408
      %v1378 = vunpack.c.0.s8 %v1377
      %v1379 = vlaneseq
      %v1380 = vshrl.u32 %v1379, 7
      %v1381 = vsub.s32 %v1378, %v1380
      %v1382 = vrot.slane %v1368, %v1381
      %v1383 = vcombine.low %v1318, %v1334
      %v1384 = vcombine.high %v1318, %v1334
      %v1386 = vunpack.c.l.s4 1934713408
      %v1387 = vunpack.c.0.s8 %v1386
      %v1388 = vlaneseq
      %v1389 = vshrl.u32 %v1388, 7
      %v1390 = vsub.s32 %v1387, %v1389
      %v1391 = vrot.slane %v1383, %v1390
      %v1393 = vunpack.c.l.s4 1934713408
      %v1394 = vunpack.c.0.s8 %v1393
      %v1395 = vlaneseq
      %v1396 = vshrl.u32 %v1395, 7
      %v1397 = vsub.s32 %v1394, %v1396
      %v1398 = vrot.slane %v1384, %v1397
      %v1399 = vcombine.low %v1343, %v1359
      %v1400 = vcombine.high %v1343, %v1359
      %v1402 = vunpack.c.l.s4 1934713408
      %v1403 = vunpack.c.0.s8 %v1402
      %v1404 = vlaneseq
      %v1405 = vshrl.u32 %v1404, 7
      %v1406 = vsub.s32 %v1403, %v1405
      %v1407 = vrot.slane %v1399, %v1406
      %v1409 = vunpack.c.l.s4 1934713408
      %v1410 = vunpack.c.0.s8 %v1409
      %v1411 = vlaneseq
      %v1412 = vshrl.u32 %v1411, 7
      %v1413 = vsub.s32 %v1410, %v1412
      %v1414 = vrot.slane %v1400, %v1413
      %v1415 = vcombine.low %v1350, %v1366
      %v1416 = vcombine.high %v1350, %v1366
      %v1418 = vunpack.c.l.s4 1934713408
      %v1419 = vunpack.c.0.s8 %v1418
      %v1420 = vlaneseq
      %v1421 = vshrl.u32 %v1420, 7
      %v1422 = vsub.s32 %v1419, %v1421
      %v1423 = vrot.slane %v1415, %v1422
      %v1425 = vunpack.c.l.s4 1934713408
      %v1426 = vunpack.c.0.s8 %v1425
      %v1427 = vlaneseq
      %v1428 = vshrl.u32 %v1427, 7
      %v1429 = vsub.s32 %v1426, %v1428
      %v1430 = vrot.slane %v1416, %v1429
      %v1431 = vcombine.low %v1375, %v1407
      %v1432 = vcombine.high %v1375, %v1407
      %v1433 = vcombine.low %v1382, %v1414
      %v1434 = vcombine.high %v1382, %v1414
      %v1435 = vcombine.low %v1391, %v1423
      %v1436 = vcombine.high %v1391, %v1423
      %v1437 = vcombine.low %v1398, %v1430
      %v1438 = vcombine.high %v1398, %v1430
      %v1439 = vcombine.low %v244, %v248
      %v1440 = vcombine.high %v244, %v248
      %v1442 = vunpack.c.l.s4 1983009808
      %v1443 = vunpack.c.0.s8 %v1442
      %v1444 = vlaneseq
      %v1445 = vshrl.u32 %v1444, 7
      %v1446 = vsub.s32 %v1443, %v1445
      %v1447 = vrot.slane %v1439, %v1446
      %v1449 = vunpack.c.l.s4 1983009808
      %v1450 = vunpack.c.0.s8 %v1449
      %v1451 = vlaneseq
      %v1452 = vshrl.u32 %v1451, 7
      %v1453 = vsub.s32 %v1450, %v1452
      %v1454 = vrot.slane %v1440, %v1453
      %v1455 = vcombine.low %v246, %v250
      %v1456 = vcombine.high %v246, %v250
      %v1458 = vunpack.c.l.s4 1983009808
      %v1459 = vunpack.c.0.s8 %v1458
      %v1460 = vlaneseq
      %v1461 = vshrl.u32 %v1460, 7
      %v1462 = vsub.s32 %v1459, %v1461
      %v1463 = vrot.slane %v1455, %v1462
      %v1465 = vunpack.c.l.s4 1983009808
      %v1466 = vunpack.c.0.s8 %v1465
      %v1467 = vlaneseq
      %v1468 = vshrl.u32 %v1467, 7
      %v1469 = vsub.s32 %v1466, %v1468
      %v1470 = vrot.slane %v1456, %v1469
      %v1471 = vcombine.low %v374, %v382
      %v1472 = vcombine.high %v374, %v382
      %v1474 = vunpack.c.l.s4 1983009808
      %v1475 = vunpack.c.0.s8 %v1474
      %v1476 = vlaneseq
      %v1477 = vshrl.u32 %v1476, 7
      %v1478 = vsub.s32 %v1475, %v1477
      %v1479 = vrot.slane %v1471, %v1478
      %v1481 = vunpack.c.l.s4 1983009808
      %v1482 = vunpack.c.0.s8 %v1481
      %v1483 = vlaneseq
      %v1484 = vshrl.u32 %v1483, 7
      %v1485 = vsub.s32 %v1482, %v1484
      %v1486 = vrot.slane %v1472, %v1485
      %v1487 = vcombine.low %v378, %v386
      %v1488 = vcombine.high %v378, %v386
      %v1490 = vunpack.c.l.s4 1983009808
      %v1491 = vunpack.c.0.s8 %v1490
      %v1492 = vlaneseq
      %v1493 = vshrl.u32 %v1492, 7
      %v1494 = vsub.s32 %v1491, %v1493
      %v1495 = vrot.slane %v1487, %v1494
      %v1497 = vunpack.c.l.s4 1983009808
      %v1498 = vunpack.c.0.s8 %v1497
      %v1499 = vlaneseq
      %v1500 = vshrl.u32 %v1499, 7
      %v1501 = vsub.s32 %v1498, %v1500
      %v1502 = vrot.slane %v1488, %v1501
      %v1503 = vcombine.low %v1447, %v1463
      %v1504 = vcombine.high %v1447, %v1463
      %v1506 = vunpack.c.l.s4 1934713408
      %v1507 = vunpack.c.0.s8 %v1506
      %v1508 = vlaneseq
      %v1509 = vshrl.u32 %v1508, 7
      %v1510 = vsub.s32 %v1507, %v1509
      %v1511 = vrot.slane %v1503, %v1510
      %v1513 = vunpack.c.l.s4 1934713408
      %v1514 = vunpack.c.0.s8 %v1513
      %v1515 = vlaneseq
      %v1516 = vshrl.u32 %v1515, 7
      %v1517 = vsub.s32 %v1514, %v1516
      %v1518 = vrot.slane %v1504, %v1517
      %v1519 = vcombine.low %v1454, %v1470
      %v1520 = vcombine.high %v1454, %v1470
      %v1522 = vunpack.c.l.s4 1934713408
      %v1523 = vunpack.c.0.s8 %v1522
      %v1524 = vlaneseq
      %v1525 = vshrl.u32 %v1524, 7
      %v1526 = vsub.s32 %v1523, %v1525
      %v1527 = vrot.slane %v1519, %v1526
      %v1529 = vunpack.c.l.s4 1934713408
      %v1530 = vunpack.c.0.s8 %v1529
      %v1531 = vlaneseq
      %v1532 = vshrl.u32 %v1531, 7
      %v1533 = vsub.s32 %v1530, %v1532
      %v1534 = vrot.slane %v1520, %v1533
      %v1535 = vcombine.low %v1479, %v1495
      %v1536 = vcombine.high %v1479, %v1495
      %v1538 = vunpack.c.l.s4 1934713408
      %v1539 = vunpack.c.0.s8 %v1538
      %v1540 = vlaneseq
      %v1541 = vshrl.u32 %v1540, 7
      %v1542 = vsub.s32 %v1539, %v1541
      %v1543 = vrot.slane %v1535, %v1542
      %v1545 = vunpack.c.l.s4 1934713408
      %v1546 = vunpack.c.0.s8 %v1545
      %v1547 = vlaneseq
      %v1548 = vshrl.u32 %v1547, 7
      %v1549 = vsub.s32 %v1546, %v1548
      %v1550 = vrot.slane %v1536, %v1549
      %v1551 = vcombine.low %v1486, %v1502
      %v1552 = vcombine.high %v1486, %v1502
      %v1554 = vunpack.c.l.s4 1934713408
      %v1555 = vunpack.c.0.s8 %v1554
      %v1556 = vlaneseq
      %v1557 = vshrl.u32 %v1556, 7
      %v1558 = vsub.s32 %v1555, %v1557
      %v1559 = vrot.slane %v1551, %v1558
      %v1561 = vunpack.c.l.s4 1934713408
      %v1562 = vunpack.c.0.s8 %v1561
      %v1563 = vlaneseq
      %v1564 = vshrl.u32 %v1563, 7
      %v1565 = vsub.s32 %v1562, %v1564
      %v1566 = vrot.slane %v1552, %v1565
      %v1567 = vcombine.low %v1511, %v1543
      %v1568 = vcombine.high %v1511, %v1543
      %v1569 = vcombine.low %v1518, %v1550
      %v1570 = vcombine.high %v1518, %v1550
      %v1571 = vcombine.low %v1527, %v1559
      %v1572 = vcombine.high %v1527, %v1559
      %v1573 = vcombine.low %v1534, %v1566
      %v1574 = vcombine.high %v1534, %v1566
      %v1575 = vcombine.low %v398, %v406
      %v1576 = vcombine.high %v398, %v406
      %v1578 = vunpack.c.l.s4 1983009808
      %v1579 = vunpack.c.0.s8 %v1578
      %v1580 = vlaneseq
      %v1581 = vshrl.u32 %v1580, 7
      %v1582 = vsub.s32 %v1579, %v1581
      %v1583 = vrot.slane %v1575, %v1582
      %v1585 = vunpack.c.l.s4 1983009808
      %v1586 = vunpack.c.0.s8 %v1585
      %v1587 = vlaneseq
      %v1588 = vshrl.u32 %v1587, 7
      %v1589 = vsub.s32 %v1586, %v1588
      %v1590 = vrot.slane %v1576, %v1589
      %v1591 = vcombine.low %v402, %v410
      %v1592 = vcombine.high %v402, %v410
      %v1594 = vunpack.c.l.s4 1983009808
      %v1595 = vunpack.c.0.s8 %v1594
      %v1596 = vlaneseq
      %v1597 = vshrl.u32 %v1596, 7
      %v1598 = vsub.s32 %v1595, %v1597
      %v1599 = vrot.slane %v1591, %v1598
      %v1601 = vunpack.c.l.s4 1983009808
      %v1602 = vunpack.c.0.s8 %v1601
      %v1603 = vlaneseq
      %v1604 = vshrl.u32 %v1603, 7
      %v1605 = vsub.s32 %v1602, %v1604
      %v1606 = vrot.slane %v1592, %v1605
      %v1607 = vcombine.low %v1583, %v1599
      %v1608 = vcombine.high %v1583, %v1599
      %v1610 = vunpack.c.l.s4 1934713408
      %v1611 = vunpack.c.0.s8 %v1610
      %v1612 = vlaneseq
      %v1613 = vshrl.u32 %v1612, 7
      %v1614 = vsub.s32 %v1611, %v1613
      %v1615 = vrot.slane %v1607, %v1614
      %v1617 = vunpack.c.l.s4 1934713408
      %v1618 = vunpack.c.0.s8 %v1617
      %v1619 = vlaneseq
      %v1620 = vshrl.u32 %v1619, 7
      %v1621 = vsub.s32 %v1618, %v1620
      %v1622 = vrot.slane %v1608, %v1621
      %v1623 = vcombine.low %v1590, %v1606
      %v1624 = vcombine.high %v1590, %v1606
      %v1626 = vunpack.c.l.s4 1934713408
      %v1627 = vunpack.c.0.s8 %v1626
      %v1628 = vlaneseq
      %v1629 = vshrl.u32 %v1628, 7
      %v1630 = vsub.s32 %v1627, %v1629
      %v1631 = vrot.slane %v1623, %v1630
      %v1633 = vunpack.c.l.s4 1934713408
      %v1634 = vunpack.c.0.s8 %v1633
      %v1635 = vlaneseq
      %v1636 = vshrl.u32 %v1635, 7
      %v1637 = vsub.s32 %v1634, %v1636
      %v1638 = vrot.slane %v1624, %v1637
      %v1639 = vcombine.high %v1615, 0.0
      %v1640 = vcombine.high %v1622, 0.0
      %v1641 = vcombine.high %v1631, 0.0
      %v1642 = vcombine.high %v1638, 0.0
      %1648 = vrot.lane.b32.xlu0 %v548, 16
      %v1649 = vpop.permute.xlu0 %1648
      %1650 = vrot.lane.b32.xlu0 %v684, 16
      %v1651 = vpop.permute.xlu0 %1650
      %1652 = vrot.lane.b32.xlu0 %v820, 16
      %v1653 = vpop.permute.xlu0 %1652
      %1654 = vrot.lane.b32.xlu0 %v956, 16
      %v1655 = vpop.permute.xlu0 %1654
      %1656 = vrot.lane.b32.xlu0 %v1027, 16
      %v1657 = vpop.permute.xlu0 %1656
      %1668 = vrot.lane.b32.xlu0 %v549, 32
      %v1669 = vpop.permute.xlu0 %1668
      %1670 = vrot.lane.b32.xlu0 %v685, 32
      %v1671 = vpop.permute.xlu0 %1670
      %1672 = vrot.lane.b32.xlu0 %v821, 32
      %v1673 = vpop.permute.xlu0 %1672
      %1674 = vrot.lane.b32.xlu0 %v957, 32
      %v1675 = vpop.permute.xlu0 %1674
      %1676 = vrot.lane.b32.xlu0 %v1010, 32
      %v1677 = vpop.permute.xlu0 %1676
      %1688 = vrot.lane.b32.xlu0 %v550, 48
      %v1689 = vpop.permute.xlu0 %1688
      %1690 = vrot.lane.b32.xlu0 %v686, 48
      %v1691 = vpop.permute.xlu0 %1690
      %1692 = vrot.lane.b32.xlu0 %v822, 48
      %v1693 = vpop.permute.xlu0 %1692
      %1694 = vrot.lane.b32.xlu0 %v958, 48
      %v1695 = vpop.permute.xlu0 %1694
      %1696 = vrot.lane.b32.xlu0 %v1028, 48
      %v1697 = vpop.permute.xlu0 %1696
      %1708 = vrot.lane.b32.xlu0 %v551, 64
      %v1709 = vpop.permute.xlu0 %1708
      %1710 = vrot.lane.b32.xlu0 %v687, 64
      %v1711 = vpop.permute.xlu0 %1710
      %1712 = vrot.lane.b32.xlu0 %v823, 64
      %v1713 = vpop.permute.xlu0 %1712
      %1714 = vrot.lane.b32.xlu0 %v959, 64
      %v1715 = vpop.permute.xlu0 %1714
      %1716 = vrot.lane.b32.xlu0 %v1019, 64
      %v1717 = vpop.permute.xlu0 %1716
      %1728 = vrot.lane.b32.xlu0 %v552, 80
      %v1729 = vpop.permute.xlu0 %1728
      %1730 = vrot.lane.b32.xlu0 %v688, 80
      %v1731 = vpop.permute.xlu0 %1730
      %1732 = vrot.lane.b32.xlu0 %v824, 80
      %v1733 = vpop.permute.xlu0 %1732
      %1734 = vrot.lane.b32.xlu0 %v960, 80
      %v1735 = vpop.permute.xlu0 %1734
      %1736 = vrot.lane.b32.xlu0 %v1029, 80
      %v1737 = vpop.permute.xlu0 %1736
      %1748 = vrot.lane.b32.xlu0 %v553, 96
      %v1749 = vpop.permute.xlu0 %1748
      %1750 = vrot.lane.b32.xlu0 %v689, 96
      %v1751 = vpop.permute.xlu0 %1750
      %1752 = vrot.lane.b32.xlu0 %v825, 96
      %v1753 = vpop.permute.xlu0 %1752
      %1754 = vrot.lane.b32.xlu0 %v961, 96
      %v1755 = vpop.permute.xlu0 %1754
      %1756 = vrot.lane.b32.xlu0 %v1026, 96
      %v1757 = vpop.permute.xlu0 %1756
      %1768 = vrot.lane.b32.xlu0 %v554, 112
      %v1769 = vpop.permute.xlu0 %1768
      %1770 = vrot.lane.b32.xlu0 %v690, 112
      %v1771 = vpop.permute.xlu0 %1770
      %1772 = vrot.lane.b32.xlu0 %v826, 112
      %v1773 = vpop.permute.xlu0 %1772
      %1774 = vrot.lane.b32.xlu0 %v962, 112
      %v1775 = vpop.permute.xlu0 %1774
      %1776 = vrot.lane.b32.xlu0 %v1030, 112
      %v1777 = vpop.permute.xlu0 %1776
      %1788 = vrot.lane.b32.xlu0 %v1160, 16
      %v1789 = vpop.permute.xlu0 %1788
      %1790 = vrot.lane.b32.xlu0 %v1296, 16
      %v1791 = vpop.permute.xlu0 %1790
      %1792 = vrot.lane.b32.xlu0 %v1432, 16
      %v1793 = vpop.permute.xlu0 %1792
      %1794 = vrot.lane.b32.xlu0 %v1568, 16
      %v1795 = vpop.permute.xlu0 %1794
      %1796 = vrot.lane.b32.xlu0 %v1639, 16
      %v1797 = vpop.permute.xlu0 %1796
      %1808 = vrot.lane.b32.xlu0 %v1161, 32
      %v1809 = vpop.permute.xlu0 %1808
      %1810 = vrot.lane.b32.xlu0 %v1297, 32
      %v1811 = vpop.permute.xlu0 %1810
      %1812 = vrot.lane.b32.xlu0 %v1433, 32
      %v1813 = vpop.permute.xlu0 %1812
      %1814 = vrot.lane.b32.xlu0 %v1569, 32
      %v1815 = vpop.permute.xlu0 %1814
      %1816 = vrot.lane.b32.xlu0 %v1622, 32
      %v1817 = vpop.permute.xlu0 %1816
      %1828 = vrot.lane.b32.xlu0 %v1162, 48
      %v1829 = vpop.permute.xlu0 %1828
      %1830 = vrot.lane.b32.xlu0 %v1298, 48
      %v1831 = vpop.permute.xlu0 %1830
      %1832 = vrot.lane.b32.xlu0 %v1434, 48
      %v1833 = vpop.permute.xlu0 %1832
      %1834 = vrot.lane.b32.xlu0 %v1570, 48
      %v1835 = vpop.permute.xlu0 %1834
      %1836 = vrot.lane.b32.xlu0 %v1640, 48
      %v1837 = vpop.permute.xlu0 %1836
      %1848 = vrot.lane.b32.xlu0 %v1163, 64
      %v1849 = vpop.permute.xlu0 %1848
      %1850 = vrot.lane.b32.xlu0 %v1299, 64
      %v1851 = vpop.permute.xlu0 %1850
      %1852 = vrot.lane.b32.xlu0 %v1435, 64
      %v1853 = vpop.permute.xlu0 %1852
      %1854 = vrot.lane.b32.xlu0 %v1571, 64
      %v1855 = vpop.permute.xlu0 %1854
      %1856 = vrot.lane.b32.xlu0 %v1631, 64
      %v1857 = vpop.permute.xlu0 %1856
      %1868 = vrot.lane.b32.xlu0 %v1164, 80
      %v1869 = vpop.permute.xlu0 %1868
      %1870 = vrot.lane.b32.xlu0 %v1300, 80
      %v1871 = vpop.permute.xlu0 %1870
      %1872 = vrot.lane.b32.xlu0 %v1436, 80
      %v1873 = vpop.permute.xlu0 %1872
      %1874 = vrot.lane.b32.xlu0 %v1572, 80
      %v1875 = vpop.permute.xlu0 %1874
      %1876 = vrot.lane.b32.xlu0 %v1641, 80
      %v1877 = vpop.permute.xlu0 %1876
      %1888 = vrot.lane.b32.xlu0 %v1165, 96
      %v1889 = vpop.permute.xlu0 %1888
      %1890 = vrot.lane.b32.xlu0 %v1301, 96
      %v1891 = vpop.permute.xlu0 %1890
      %1892 = vrot.lane.b32.xlu0 %v1437, 96
      %v1893 = vpop.permute.xlu0 %1892
      %1894 = vrot.lane.b32.xlu0 %v1573, 96
      %v1895 = vpop.permute.xlu0 %1894
      %1896 = vrot.lane.b32.xlu0 %v1638, 96
      %v1897 = vpop.permute.xlu0 %1896
      %1908 = vrot.lane.b32.xlu0 %v1166, 112
      %v1909 = vpop.permute.xlu0 %1908
      %1910 = vrot.lane.b32.xlu0 %v1302, 112
      %v1911 = vpop.permute.xlu0 %1910
      %1912 = vrot.lane.b32.xlu0 %v1438, 112
      %v1913 = vpop.permute.xlu0 %1912
      %1914 = vrot.lane.b32.xlu0 %v1574, 112
      %v1915 = vpop.permute.xlu0 %1914
      %1916 = vrot.lane.b32.xlu0 %v1642, 112
      %v1917 = vpop.permute.xlu0 %1916
      %vm1923 = vcmask 130048
      %v1924 = vsel %vm1923, %v547, %v1649
      %v1925 = vsel %vm1923, %v683, %v1651
      %v1926 = vsel %vm1923, %v819, %v1653
      %v1927 = vsel %vm1923, %v955, %v1655
      %v1928 = vsel %vm1923, %v1003, %v1657
      %vm1929 = vcmask 261120
      %v1930 = vsel %vm1929, %v1924, %v1669
      %v1931 = vsel %vm1929, %v1925, %v1671
      %v1932 = vsel %vm1929, %v1926, %v1673
      %v1933 = vsel %vm1929, %v1927, %v1675
      %v1934 = vsel %vm1929, %v1928, %v1677
      %vm1935 = vcmask 392192
      %v1936 = vsel %vm1935, %v1930, %v1689
      %v1937 = vsel %vm1935, %v1931, %v1691
      %v1938 = vsel %vm1935, %v1932, %v1693
      %v1939 = vsel %vm1935, %v1933, %v1695
      %v1940 = vsel %vm1935, %v1934, %v1697
      %vm1941 = vcmask 523264
      %v1942 = vsel %vm1941, %v1936, %v1709
      %v1943 = vsel %vm1941, %v1937, %v1711
      %v1944 = vsel %vm1941, %v1938, %v1713
      %v1945 = vsel %vm1941, %v1939, %v1715
      %v1946 = vsel %vm1941, %v1940, %v1717
      %vm1947 = vcmask 654336
      %v1948 = vsel %vm1947, %v1942, %v1729
      %v1949 = vsel %vm1947, %v1943, %v1731
      %v1950 = vsel %vm1947, %v1944, %v1733
      %v1951 = vsel %vm1947, %v1945, %v1735
      %v1952 = vsel %vm1947, %v1946, %v1737
      %vm1953 = vcmask 785408
      %v1954 = vsel %vm1953, %v1948, %v1749
      %v1955 = vsel %vm1953, %v1949, %v1751
      %v1956 = vsel %vm1953, %v1950, %v1753
      %v1957 = vsel %vm1953, %v1951, %v1755
      %v1958 = vsel %vm1953, %v1952, %v1757
      %vm1959 = vcmask 916480
      %v1960 = vsel %vm1959, %v1954, %v1769
      %v1961 = vsel %vm1959, %v1955, %v1771
      %v1962 = vsel %vm1959, %v1956, %v1773
      %v1963 = vsel %vm1959, %v1957, %v1775
      %v1964 = vsel %vm1959, %v1958, %v1777
      %v1965 = vsel %vm1923, %v1159, %v1789
      %v1966 = vsel %vm1923, %v1295, %v1791
      %v1967 = vsel %vm1923, %v1431, %v1793
      %v1968 = vsel %vm1923, %v1567, %v1795
      %v1969 = vsel %vm1923, %v1615, %v1797
      %v1970 = vsel %vm1929, %v1965, %v1809
      %v1971 = vsel %vm1929, %v1966, %v1811
      %v1972 = vsel %vm1929, %v1967, %v1813
      %v1973 = vsel %vm1929, %v1968, %v1815
      %v1974 = vsel %vm1929, %v1969, %v1817
      %v1975 = vsel %vm1935, %v1970, %v1829
      %v1976 = vsel %vm1935, %v1971, %v1831
      %v1977 = vsel %vm1935, %v1972, %v1833
      %v1978 = vsel %vm1935, %v1973, %v1835
      %v1979 = vsel %vm1935, %v1974, %v1837
      %v1980 = vsel %vm1941, %v1975, %v1849
      %v1981 = vsel %vm1941, %v1976, %v1851
      %v1982 = vsel %vm1941, %v1977, %v1853
      %v1983 = vsel %vm1941, %v1978, %v1855
      %v1984 = vsel %vm1941, %v1979, %v1857
      %v1985 = vsel %vm1947, %v1980, %v1869
      %v1986 = vsel %vm1947, %v1981, %v1871
      %v1987 = vsel %vm1947, %v1982, %v1873
      %v1988 = vsel %vm1947, %v1983, %v1875
      %v1989 = vsel %vm1947, %v1984, %v1877
      %v1990 = vsel %vm1953, %v1985, %v1889
      %v1991 = vsel %vm1953, %v1986, %v1891
      %v1992 = vsel %vm1953, %v1987, %v1893
      %v1993 = vsel %vm1953, %v1988, %v1895
      %v1994 = vsel %vm1953, %v1989, %v1897
      %v1995 = vsel %vm1959, %v1990, %v1909
      %v1996 = vsel %vm1959, %v1991, %v1911
      %v1997 = vsel %vm1959, %v1992, %v1913
      %v1998 = vsel %vm1959, %v1993, %v1915
      %v1999 = vsel %vm1959, %v1994, %v1917
      %v2000 = vld [vmem:[%s1] sm:$0xff]
      %vm2001 = vcmask 293888
      %v2003 = vsel %vm2001, %v2000, 0
      %vm2005 = vcmask 1043456
      %v2007 = vsel %vm2005, %v1964, 0
      %v2010 = vsel %vm2005, %v1999, 0
      %2012 = vmatprep.subr.mxu0 %v1995
      %2013 = vmatpush1.msra.mxu0 %v1960
      %2014 = vmatprep.subr.mxu0 %v1996
      %2015 = vmatpush1.msra.mxu0 %v1961
      %2016 = vmatprep.subr.mxu0 %v1997
      %2017 = vmatpush1.msra.mxu0 %v1962
      %2018 = vmatprep.subr.mxu0 %v1998
      %2019 = vmatpush1.msra.mxu0 %v1963
      %2020 = vmatprep.subr.mxu0 %v2010
      %2021 = vmatpush1.msra.mxu0 %v2007
      %2022 = vmatprep.subr.mxu0 0.0
      %2023 = vmatpush1.msra.mxu0 0.0
      %2024 = vmatprep.subr.mxu0 0.0
      %2025 = vmatpush1.msra.mxu0 0.0
      %2026 = vmatprep.subr.mxu0 0.0
      %2027 = vmatpush1.msra.mxu0 0.0
      %2028 = vmatprep.subr.mxu0 0.0
      %2029 = vmatpush1.msra.mxu0 0.0
      %2030 = vmatprep.subr.mxu0 0.0
      %2031 = vmatpush1.msra.mxu0 0.0
      %2032 = vmatprep.subr.mxu0 0.0
      %2033 = vmatpush1.msra.mxu0 0.0
      %2034 = vmatprep.subr.mxu0 0.0
      %2035 = vmatpush1.msra.mxu0 0.0
      %2036 = vmatprep.subr.mxu0 0.0
      %2037 = vmatpush1.msra.mxu0 0.0
      %2038 = vmatprep.subr.mxu0 0.0
      %2039 = vmatpush1.msra.mxu0 0.0
      %2040 = vmatprep.subr.mxu0 0.0
      %2041 = vmatpush1.msra.mxu0 0.0
      %2042 = vmatprep.subr.mxu0 0.0
      %2043 = vmatpush1.msra.mxu0 0.0
      %2044 = vmatprep.subr.mxu0 0.0
      %2045 = vmatpush1.msra.mxu0 0.0
      %2046 = vmatprep.subr.mxu0 0.0
      %2047 = vmatpush1.msra.mxu0 0.0
      %2048 = vmatprep.subr.mxu0 0.0
      %2049 = vmatpush1.msra.mxu0 0.0
      %2050 = vmatprep.subr.mxu0 0.0
      %2051 = vmatpush1.msra.mxu0 0.0
      %2052 = vmatprep.subr.mxu0 0.0
      %2053 = vmatpush1.msra.mxu0 0.0
      %2054 = vmatprep.subr.mxu0 0.0
      %2055 = vmatpush1.msra.mxu0 0.0
      %2056 = vmatprep.subr.mxu0 0.0
      %2057 = vmatpush1.msra.mxu0 0.0
      %2058 = vmatprep.subr.mxu0 0.0
      %2059 = vmatpush1.msra.mxu0 0.0
      %2060 = vmatprep.subr.mxu0 0.0
      %2061 = vmatpush1.msra.mxu0 0.0
      %2062 = vmatprep.subr.mxu0 0.0
      %2063 = vmatpush1.msra.mxu0 0.0
      %2064 = vmatprep.subr.mxu0 0.0
      %2065 = vmatpush1.msra.mxu0 0.0
      %2066 = vmatprep.subr.mxu0 0.0
      %2067 = vmatpush1.msra.mxu0 0.0
      %2068 = vmatprep.subr.mxu0 0.0
      %2069 = vmatpush1.msra.mxu0 0.0
      %2070 = vmatprep.subr.mxu0 0.0
      %2071 = vmatpush1.msra.mxu0 0.0
      %2072 = vmatprep.subr.mxu0 0.0
      %2073 = vmatpush1.msra.mxu0 0.0
      %2074 = vmatprep.subr.mxu0 0.0
      %2075 = vmatpush1.msra.mxu0 0.0
      %2076 = vmatprep.mubr.f32.mxu0 0.0
      %2077 = vmatmul.mubr.f32.gmra.mrb[0].mxu0 %v2003
      %v2078 = vpop.f32.mrb[0].mxu0
      %v2079 = vadd.f32 0.0, %v2078
      %v2080 = vpop.f32.mrb[0].mxu0
      %v2081 = vadd.f32 0.0, %v2080
      %2082 = vdwg.mxu0
      %v2083 = vld [vmem:[%s2] sm:$0xff]
      %2085 = vset.pattern.permute.xlu0 0
      %2086 = vperm.xlu0 %2085, %v2083
      %v2087 = vpop.permute.xlu0 %2086
      %v2089 = vmul.f32 %v2079, %v2087
      %v2090 = vmul.f32 %v2081, %v2087
      %v2091 = vld [vmem:[%s3] sm:$0xff]
      %2093 = vset.pattern.permute.xlu0 0
      %2094 = vperm.xlu0 %2093, %v2091
      %v2095 = vpop.permute.xlu0 %2094
      %v2097 = vadd.f32 %v2089, %v2095
      %v2098 = vadd.f32 %v2090, %v2095
      %v2099 = vmax.f32 %v2097, 0.0
      %v2100 = vmax.f32 %v2098, 0.0
      %2101 = vst [vmem:[%s219] sm:$0xff] %v2099
      %2102 = vst [vmem:[%s219 + $0x8] sm:$0xff] %v2100
      %s2103 = smul.u32 2, %s20
      %p2104 = scmp.lt.s32.totalorder %s19, 1
      %s2105 = scalar_select %p2104, %s19, 1
      %p2106 = scmp.lt.s32.totalorder %s2103, 1
      %s2107 = scalar_select %p2106, %s2103, 1
      %s2108 = smul.addr %s2105, 2
      %s2109 = sadd.s32 %s2107, %s2108
      %s2110 = smul.addr %s2109, 8
      %s2111 = scalar_lea.vmem %s4, %s2110
      // Predicated region
      $region37: #{conv2d_block_forward.1} parent=35 // pred_check
        %p2112 = pneg %p136
      $region38: #{conv2d_block_forward.1} parent=35 // pred_check_branch
        %2114 = sbr.rel (%p2112) target = $region40
      $region39: #{conv2d_block_forward.1} parent=35 // pred_region
        %s2115 = smul.u32 2, %s20
      $region40: #{conv2d_block_forward.1} parent=35 // pred_fallthru
        _
    $region36: #{conv2d_block_forward.1} parent=5 // pred_fallthru
      _
    %p2116 = scmp.le.s32.totalorder 2, %s10
    // Predicated region
    $region41: #{conv2d_block_forward.1} parent=5 // pred_check
      %p2117 = pneg %p2116
    $region42: #{conv2d_block_forward.1} parent=5 // pred_check_branch
      %2119 = sbr.rel (%p2117) target = $region44
    $region43: #{conv2d_block_forward.1} parent=5 // pred_region
      %s2120 = ssub.s32 %s10, 2
      // Predicated region
      $region45: #{conv2d_block_forward.1} parent=43 // pred_check
        %p2121 = pneg %p142
      $region46: #{conv2d_block_forward.1} parent=43 // pred_check_branch
        %2123 = sbr.rel (%p2121) target = $region48
      $region47: #{conv2d_block_forward.1} parent=43 // pred_region
        %s2124 = smul.u32 2, %s22
        %p2125 = scmp.lt.s32.totalorder %s21, 1
        %s2126 = scalar_select %p2125, %s21, 1
        %p2127 = scmp.lt.s32.totalorder %s2124, 1
        %s2128 = scalar_select %p2127, %s2124, 1
        %s2129 = smul.addr %s2126, 2
        %s2130 = sadd.s32 %s2128, %s2129
        %s2131 = smul.addr %s2130, 8
        %s2132 = scalar_lea.vmem %s4, %s2131
      $region48: #{conv2d_block_forward.1} parent=43 // pred_fallthru
        _
    $region44: #{conv2d_block_forward.1} parent=5 // pred_fallthru
      _
  $region6: #{conv2d_block_forward.1} parent=0 // loop_footer
    %s14 = sadd.s32 1, %s10
  $region7: #{conv2d_block_forward.1} parent=0 // loop_footer_branch
    %9 = sbr.rel target = $region3
  $region8: #{conv2d_block_forward.1} parent=0 // loop_exit
    _

</llo_original>
